<compile_context>
chip_gen: v7x
topology: tpu7x:2x2x1
jax: 0.10.0
libtpu: 0.0.40
codegen_flags: <defaults>
</compile_context>

<pallas_src>
import jax
import jax.numpy as jnp
from jax import lax
from jax.experimental import pallas as pl
from jax.experimental.pallas import tpu as pltpu


def fire_kernel(x_ref, w_sq_ref, b_sq_ref, w_e1_ref, w_e3_ref, b_ex_ref,
                out_ref, pad_ref):
    NB, H, W, Cin = x_ref.shape
    Sq = w_sq_ref.shape[1]
    Cout = out_ref.shape[-1]

    # ---- squeeze 1x1 conv + ReLU (bf16 MXU, f32 accumulate) ----
    x = x_ref[...].reshape(NB * H * W, Cin)                  # already bf16
    s = jnp.dot(x, w_sq_ref[...], preferred_element_type=jnp.float32)
    s = jnp.maximum(s + b_sq_ref[...], 0.0)
    s16 = s.astype(jnp.bfloat16)                             # (NB*H*W, Sq)

    # ---- expand 1x1 conv (bias/ReLU fused later with the e3 half) ----
    d1 = jnp.dot(s16, w_e1_ref[...], preferred_element_type=jnp.float32)

    # ---- expand 3x3 conv (padding=1) ----
    # Halo scratch: zero only the 1-pixel border (interior is fully rewritten
    # every step; do NOT gate this on program_id==0 -- under megacore
    # "parallel" sharding each core owns its own scratch instance).
    zrow = jnp.zeros((NB, 1, W + 2, Sq), jnp.bfloat16)
    pad_ref[:, 0:1, :, :] = zrow
    pad_ref[:, H + 1:H + 2, :, :] = zrow
    zcol = jnp.zeros((NB, H, 1, Sq), jnp.bfloat16)
    pad_ref[:, 1:H + 1, 0:1, :] = zcol
    pad_ref[:, 1:H + 1, W + 1:W + 2, :] = zcol
    pad_ref[:, 1:H + 1, 1:W + 1, :] = s16.reshape(NB, H, W, Sq)

    # Hoist the expensive kx (sublane-shifted) windows: 3 shifted maps of the
    # full padded height, then the 9 taps are cheap ky (major-dim) slices.
    cols = [pad_ref[:, :, kx:kx + W, :] for kx in range(3)]  # (NB, H+2, W, Sq)
    taps = [cols[kx][:, ky:ky + H, :, :]                     # order = (ky, kx)
            for ky in range(3) for kx in range(3)]
    x9 = jnp.concatenate(taps, axis=-1).reshape(NB * H * W, 9 * Sq)
    d3 = jnp.dot(x9, w_e3_ref[...], preferred_element_type=jnp.float32)

    # ---- fused bias + ReLU on the lane-dense (E1+E3) block, single store ----
    out = jnp.maximum(jnp.concatenate([d1, d3], axis=-1) + b_ex_ref[...], 0.0)
    out_ref[...] = out.reshape(NB, H, W, Cout).astype(out_ref.dtype)


def _vmem_capacity_bytes():
    try:
        return int(pltpu.get_tpu_info().vmem_capacity_bytes)
    except Exception:
        return 128 * 1024 * 1024          # conservative fallback


def _pick_batch_block(N, H, W, Cin, Sq, Cout, budget_bytes, cap=32,
                      min_steps=4):
    """Largest divisor of N whose per-step VMEM footprint fits the budget,
    preferring choices that leave >= min_steps grid steps for pipelining /
    megacore sharding."""
    per_img = (
        2 * H * W * Cin * 2                     # bf16 input block, double-buffered
        + 2 * H * W * Cout * 2                  # bf16 output block, double-buffered
        + (H + 2) * (W + 2) * Sq * 2            # bf16 halo scratch
        + H * W * Sq * (4 + 2)                  # f32 squeeze acc + bf16 copy
        + (H + 2) * W * 3 * Sq * 2              # 3 kx-shifted column maps (bf16)
        + H * W * 9 * Sq * 2                    # stacked im2col temp (bf16)
        + 2 * H * W * Cout * 4                  # f32 expand results + concat copy
    )
    fits = [c for c in range(1, min(N, cap) + 1)
            if N % c == 0 and c * per_img <= budget_bytes]
    if not fits:
        return 1
    pipelined = [c for c in fits if N // c >= min_steps]
    if pipelined:
        return max(pipelined)
    two_step = [c for c in fits if N // c >= 2]
    return max(two_step) if two_step else max(fits)


def fire_forward_nhwc(x_nhwc, params, *, batch_block=None):
    """(N, H, W, Cin) -> (N, H, W, E1+E3) bf16 (fast path for NHWC callers)."""
    w_sq, b_sq, w_e1, b_e1, w_e3, b_e3 = params
    N, H, W, Cin = x_nhwc.shape
    Sq = w_sq.shape[1]
    E1 = w_e1.shape[1]
    E3 = w_e3.shape[3]
    Cout = E1 + E3

    # bf16 activations + weights feed the MXU natively and halve HBM traffic;
    # biases stay f32 and are added after the f32 accumulation.
    x16 = x_nhwc.astype(jnp.bfloat16)
    w_sq16 = w_sq.astype(jnp.bfloat16)
    w_e116 = w_e1.astype(jnp.bfloat16)
    w_e3f = w_e3.reshape(9 * Sq, E3).astype(jnp.bfloat16)    # (ky,kx,cin) flat
    b_sq2 = b_sq.reshape(1, Sq).astype(jnp.float32)
    b_ex = jnp.concatenate([b_e1, b_e3]).reshape(1, Cout).astype(jnp.float32)

    # Chip-aware VMEM budgeting (v7x: 64 MiB, v5e/v6e: 128 MiB per core).
    vmem_cap = _vmem_capacity_bytes()
    vmem_limit = min((vmem_cap * 3) // 4, 96 * 1024 * 1024)

    if batch_block is None:
        NB = _pick_batch_block(N, H, W, Cin, Sq, Cout,
                               budget_bytes=vmem_limit // 2)
    else:
        NB = batch_block
        if N % NB != 0:
            raise ValueError(f"batch_block={NB} must divide batch size N={N}")

    flops = 2 * N * H * W * Sq * (Cin + E1 + 9 * E3)
    bytes_accessed = (N * H * W * (Cin + Cout) * 2                  # bf16 I/O
                      + (Cin * Sq + Sq * E1 + 9 * Sq * E3) * 2      # bf16 weights
                      + (Sq + Cout) * 4)                            # f32 biases

    return pl.pallas_call(
        fire_kernel,
        out_shape=jax.ShapeDtypeStruct((N, H, W, Cout), jnp.bfloat16),
        grid_spec=pltpu.PrefetchScalarGridSpec(
            num_scalar_prefetch=0,
            grid=(N // NB,),
            in_specs=[
                pl.BlockSpec((NB, H, W, Cin), lambda n: (n, 0, 0, 0)),
                pl.BlockSpec((Cin, Sq), lambda n: (0, 0)),
                pl.BlockSpec((1, Sq), lambda n: (0, 0)),
                pl.BlockSpec((Sq, E1), lambda n: (0, 0)),
                pl.BlockSpec((9 * Sq, E3), lambda n: (0, 0)),
                pl.BlockSpec((1, Cout), lambda n: (0, 0)),
            ],
            out_specs=pl.BlockSpec((NB, H, W, Cout), lambda n: (n, 0, 0, 0)),
            scratch_shapes=[pltpu.VMEM((NB, H + 2, W + 2, Sq), jnp.bfloat16)],
        ),
        compiler_params=pltpu.CompilerParams(
            dimension_semantics=("parallel",),
            vmem_limit_bytes=vmem_limit,
        ),
        cost_estimate=pl.CostEstimate(
            flops=flops, transcendentals=0, bytes_accessed=bytes_accessed),
    )(x16, w_sq16, b_sq2, w_e116, w_e3f, b_ex)


def fire_forward(x_nchw, params, *, batch_block=None):
    """PyTorch-interface adapter: (N, Cin, H, W) f32 -> (N, E1+E3, H, W) f32.

    The two transposes (and the f32 cast) are interface costs only; callers
    that can keep NHWC/bf16 should use fire_forward_nhwc directly and skip
    both HBM passes.  The channel concat already happens inside the kernel.
    """
    x = jnp.transpose(x_nchw, (0, 2, 3, 1))
    out = fire_forward_nhwc(x, params, batch_block=batch_block)
    return jnp.transpose(out, (0, 3, 1, 2)).astype(jnp.float32)


def fire_reference(x_nchw, params):
    """Pure-JAX reference (lax.conv, f32) for correctness checking."""
    w_sq, b_sq, w_e1, b_e1, w_e3, b_e3 = params
    x = jnp.transpose(x_nchw, (0, 2, 3, 1))       # NHWC
    dn = ('NHWC', 'HWIO', 'NHWC')

    s = lax.conv_general_dilated(x, w_sq.reshape(1, 1, *w_sq.shape),
                                 (1, 1), 'VALID', dimension_numbers=dn)
    s = jnp.maximum(s + b_sq.reshape(1, 1, 1, -1), 0.0)

    e1 = lax.conv_general_dilated(s, w_e1.reshape(1, 1, *w_e1.shape),
                                  (1, 1), 'VALID', dimension_numbers=dn)
    e1 = jnp.maximum(e1 + b_e1.reshape(1, 1, 1, -1), 0.0)

    e3 = lax.conv_general_dilated(s, w_e3, (1, 1),
                                  ((1, 1), (1, 1)), dimension_numbers=dn)
    e3 = jnp.maximum(e3 + b_e3.reshape(1, 1, 1, -1), 0.0)

    out = jnp.concatenate([e1, e3], axis=-1)
    return jnp.transpose(out, (0, 3, 1, 2))


def make_params(key, inplanes, squeeze_planes, e1_planes, e3_planes):
    ks = jax.random.split(key, 6)
    scale = 0.1
    w_sq = scale * jax.random.normal(ks[0], (inplanes, squeeze_planes), jnp.float32)
    b_sq = scale * jax.random.normal(ks[1], (squeeze_planes,), jnp.float32)
    w_e1 = scale * jax.random.normal(ks[2], (squeeze_planes, e1_planes), jnp.float32)
    b_e1 = scale * jax.random.normal(ks[3], (e1_planes,), jnp.float32)
    w_e3 = scale * jax.random.normal(ks[4], (3, 3, squeeze_planes, e3_planes), jnp.float32)
    b_e3 = scale * jax.random.normal(ks[5], (e3_planes,), jnp.float32)
    return (w_sq, b_sq, w_e1, b_e1, w_e3, b_e3)


if __name__ == "__main__":
    key = jax.random.PRNGKey(0)
    k_x, k_p = jax.random.split(key)

    # Fire(inplanes=4, squeeze_planes=8, expand1x1_planes=16, expand3x3_planes=16)
    N, Cin, H, W = 2, 4, 16, 16
    Sq, E1, E3 = 8, 16, 16

    x = jax.random.normal(k_x, (N, Cin, H, W), jnp.float32)
    params = make_params(k_p, Cin, Sq, E1, E3)

    out = jax.block_until_ready(fire_forward(x, params))
    ref = fire_reference(x, params)

    assert out.shape == (N, E1 + E3, H, W), out.shape
    max_err = float(jnp.max(jnp.abs(out - ref)))
    # bf16 matmul inputs and bf16 kernel output vs f32 reference -> relaxed tol
    assert max_err < 3e-2, max_err

    print("KERNEL_OK")
</pallas_src>

<mosaic_0001>
module attributes {stable_mosaic.version = 11 : i64} {
  func.func @fire_kernel(%arg0: i32, %arg1: memref<1x16x16x4xbf16, #tpu.memory_space<vmem>>, %arg2: memref<4x8xbf16, #tpu.memory_space<vmem>>, %arg3: memref<1x8xf32, #tpu.memory_space<vmem>>, %arg4: memref<8x16xbf16, #tpu.memory_space<vmem>>, %arg5: memref<72x16xbf16, #tpu.memory_space<vmem>>, %arg6: memref<1x32xf32, #tpu.memory_space<vmem>>, %arg7: memref<1x16x16x32xbf16, #tpu.memory_space<vmem>>, %arg8: memref<1x18x18x8xbf16, #tpu.memory_space<vmem>>) attributes {dimension_semantics = [#tpu.dimension_semantics<parallel>], iteration_bounds = array<i64: 2>, scalar_prefetch = 0 : i64, scratch_operands = 1 : i64, tpu.core_type = #tpu.core_type<tc>, window_params = [{transform_indices = @transform_0, window_bounds = array<i64: 1, 16, 16, 4>}, {pipeline_mode = #tpu.pipeline_mode<synchronous>, transform_indices = @transform_1, window_bounds = array<i64: 4, 8>}, {pipeline_mode = #tpu.pipeline_mode<synchronous>, transform_indices = @transform_2, window_bounds = array<i64: 1, 8>}, {pipeline_mode = #tpu.pipeline_mode<synchronous>, transform_indices = @transform_3, window_bounds = array<i64: 8, 16>}, {pipeline_mode = #tpu.pipeline_mode<synchronous>, transform_indices = @transform_4, window_bounds = array<i64: 72, 16>}, {pipeline_mode = #tpu.pipeline_mode<synchronous>, transform_indices = @transform_5, window_bounds = array<i64: 1, 32>}, {transform_indices = @transform_6, window_bounds = array<i64: 1, 16, 16, 32>}]} {
    %c0 = arith.constant 0 : index
    %c0_0 = arith.constant 0 : index
    %c0_1 = arith.constant 0 : index
    %c0_2 = arith.constant 0 : index
    %0 = vector.load %arg1[%c0, %c0_0, %c0_1, %c0_2] : memref<1x16x16x4xbf16, #tpu.memory_space<vmem>>, vector<1x16x16x4xbf16>
    %1 = vector.shape_cast %0 : vector<1x16x16x4xbf16> to vector<256x4xbf16>
    %c0_3 = arith.constant 0 : index
    %c0_4 = arith.constant 0 : index
    %2 = vector.load %arg2[%c0_3, %c0_4] : memref<4x8xbf16, #tpu.memory_space<vmem>>, vector<4x8xbf16>
    %cst = arith.constant dense<0.000000e+00> : vector<256x8xf32>
    %3 = tpu.matmul %1, %2, %cst {dimension_numbers = #tpu.dot_dimension_numbers<[1], [0], [0], [1], [0, 0, 1, 1], [], []>} : vector<256x4xbf16>, vector<4x8xbf16>, vector<256x8xf32> -> vector<256x8xf32>
    %c0_5 = arith.constant 0 : index
    %c0_6 = arith.constant 0 : index
    %4 = vector.load %arg3[%c0_5, %c0_6] : memref<1x8xf32, #tpu.memory_space<vmem>>, vector<1x8xf32>
    %5 = vector.broadcast %4 : vector<1x8xf32> to vector<256x8xf32>
    %6 = arith.addf %3, %5 : vector<256x8xf32>
    %cst_7 = arith.constant 0.000000e+00 : f32
    %7 = vector.broadcast %cst_7 : f32 to vector<256x8xf32>
    %8 = arith.maximumf %6, %7 : vector<256x8xf32>
    %9 = arith.truncf %8 : vector<256x8xf32> to vector<256x8xbf16>
    %c0_8 = arith.constant 0 : index
    %c0_9 = arith.constant 0 : index
    %10 = vector.load %arg4[%c0_8, %c0_9] : memref<8x16xbf16, #tpu.memory_space<vmem>>, vector<8x16xbf16>
    %cst_10 = arith.constant dense<0.000000e+00> : vector<256x16xf32>
    %11 = tpu.matmul %9, %10, %cst_10 {dimension_numbers = #tpu.dot_dimension_numbers<[1], [0], [0], [1], [0, 0, 1, 1], [], []>} : vector<256x8xbf16>, vector<8x16xbf16>, vector<256x16xf32> -> vector<256x16xf32>
    %cst_11 = arith.constant 0.000000e+00 : bf16
    %12 = vector.broadcast %cst_11 : bf16 to vector<1x1x18x8xbf16>
    %c0_12 = arith.constant 0 : index
    %c0_13 = arith.constant 0 : index
    %c0_14 = arith.constant 0 : index
    %c0_15 = arith.constant 0 : index
    %13 = vector.load %arg8[%c0_12, %c0_13, %c0_14, %c0_15] : memref<1x18x18x8xbf16, #tpu.memory_space<vmem>>, vector<1x1x18x8xbf16>
    tpu.vector_store %arg8[%c0_12, %c0_13, %c0_14, %c0_15], %12 {strides = array<i32>} : memref<1x18x18x8xbf16, #tpu.memory_space<vmem>>, vector<1x1x18x8xbf16>,
    %c0_16 = arith.constant 0 : index
    %c17 = arith.constant 17 : index
    %c0_17 = arith.constant 0 : index
    %c0_18 = arith.constant 0 : index
    %14 = vector.load %arg8[%c0_16, %c17, %c0_17, %c0_18] : memref<1x18x18x8xbf16, #tpu.memory_space<vmem>>, vector<1x1x18x8xbf16>
    tpu.vector_store %arg8[%c0_16, %c17, %c0_17, %c0_18], %12 {strides = array<i32>} : memref<1x18x18x8xbf16, #tpu.memory_space<vmem>>, vector<1x1x18x8xbf16>,
    %cst_19 = arith.constant 0.000000e+00 : bf16
    %15 = vector.broadcast %cst_19 : bf16 to vector<1x16x1x8xbf16>
    %c0_20 = arith.constant 0 : index
    %c1 = arith.constant 1 : index
    %c0_21 = arith.constant 0 : index
    %c0_22 = arith.constant 0 : index
    %16 = vector.load %arg8[%c0_20, %c1, %c0_21, %c0_22] : memref<1x18x18x8xbf16, #tpu.memory_space<vmem>>, vector<1x16x1x8xbf16>
    tpu.vector_store %arg8[%c0_20, %c1, %c0_21, %c0_22], %15 {strides = array<i32>} : memref<1x18x18x8xbf16, #tpu.memory_space<vmem>>, vector<1x16x1x8xbf16>,
    %c0_23 = arith.constant 0 : index
    %c1_24 = arith.constant 1 : index
    %c17_25 = arith.constant 17 : index
    %c0_26 = arith.constant 0 : index
    %17 = vector.load %arg8[%c0_23, %c1_24, %c17_25, %c0_26] : memref<1x18x18x8xbf16, #tpu.memory_space<vmem>>, vector<1x16x1x8xbf16>
    tpu.vector_store %arg8[%c0_23, %c1_24, %c17_25, %c0_26], %15 {strides = array<i32>} : memref<1x18x18x8xbf16, #tpu.memory_space<vmem>>, vector<1x16x1x8xbf16>,
    %18 = vector.shape_cast %9 : vector<256x8xbf16> to vector<1x16x16x8xbf16>
    %c0_27 = arith.constant 0 : index
    %c1_28 = arith.constant 1 : index
    %c1_29 = arith.constant 1 : index
    %c0_30 = arith.constant 0 : index
    %19 = vector.load %arg8[%c0_27, %c1_28, %c1_29, %c0_30] : memref<1x18x18x8xbf16, #tpu.memory_space<vmem>>, vector<1x16x16x8xbf16>
    tpu.vector_store %arg8[%c0_27, %c1_28, %c1_29, %c0_30], %18 {strides = array<i32>} : memref<1x18x18x8xbf16, #tpu.memory_space<vmem>>, vector<1x16x16x8xbf16>,
    %c0_31 = arith.constant 0 : index
    %c0_32 = arith.constant 0 : index
    %c0_33 = arith.constant 0 : index
    %c0_34 = arith.constant 0 : index
    %20 = vector.load %arg8[%c0_31, %c0_32, %c0_33, %c0_34] : memref<1x18x18x8xbf16, #tpu.memory_space<vmem>>, vector<1x18x16x8xbf16>
    %c0_35 = arith.constant 0 : index
    %c0_36 = arith.constant 0 : index
    %c1_37 = arith.constant 1 : index
    %c0_38 = arith.constant 0 : index
    %21 = vector.load %arg8[%c0_35, %c0_36, %c1_37, %c0_38] : memref<1x18x18x8xbf16, #tpu.memory_space<vmem>>, vector<1x18x16x8xbf16>
    %c0_39 = arith.constant 0 : index
    %c0_40 = arith.constant 0 : index
    %c2 = arith.constant 2 : index
    %c0_41 = arith.constant 0 : index
    %22 = vector.load %arg8[%c0_39, %c0_40, %c2, %c0_41] : memref<1x18x18x8xbf16, #tpu.memory_space<vmem>>, vector<1x18x16x8xbf16>
    %23 = vector.extract_strided_slice %20 {offsets = [0, 0, 0, 0], sizes = [1, 16, 16, 8], strides = [1, 1, 1, 1]} : vector<1x18x16x8xbf16> to vector<1x16x16x8xbf16>
    %24 = vector.extract_strided_slice %21 {offsets = [0, 0, 0, 0], sizes = [1, 16, 16, 8], strides = [1, 1, 1, 1]} : vector<1x18x16x8xbf16> to vector<1x16x16x8xbf16>
    %25 = vector.extract_strided_slice %22 {offsets = [0, 0, 0, 0], sizes = [1, 16, 16, 8], strides = [1, 1, 1, 1]} : vector<1x18x16x8xbf16> to vector<1x16x16x8xbf16>
    %26 = vector.extract_strided_slice %20 {offsets = [0, 1, 0, 0], sizes = [1, 16, 16, 8], strides = [1, 1, 1, 1]} : vector<1x18x16x8xbf16> to vector<1x16x16x8xbf16>
    %27 = vector.extract_strided_slice %21 {offsets = [0, 1, 0, 0], sizes = [1, 16, 16, 8], strides = [1, 1, 1, 1]} : vector<1x18x16x8xbf16> to vector<1x16x16x8xbf16>
    %28 = vector.extract_strided_slice %22 {offsets = [0, 1, 0, 0], sizes = [1, 16, 16, 8], strides = [1, 1, 1, 1]} : vector<1x18x16x8xbf16> to vector<1x16x16x8xbf16>
    %29 = vector.extract_strided_slice %20 {offsets = [0, 2, 0, 0], sizes = [1, 16, 16, 8], strides = [1, 1, 1, 1]} : vector<1x18x16x8xbf16> to vector<1x16x16x8xbf16>
    %30 = vector.extract_strided_slice %21 {offsets = [0, 2, 0, 0], sizes = [1, 16, 16, 8], strides = [1, 1, 1, 1]} : vector<1x18x16x8xbf16> to vector<1x16x16x8xbf16>
    %31 = vector.extract_strided_slice %22 {offsets = [0, 2, 0, 0], sizes = [1, 16, 16, 8], strides = [1, 1, 1, 1]} : vector<1x18x16x8xbf16> to vector<1x16x16x8xbf16>
    %32 = tpu.concatenate %23, %24, %25, %26, %27, %28, %29, %30, %31 in 3 : vector<1x16x16x8xbf16>, vector<1x16x16x8xbf16>, vector<1x16x16x8xbf16>, vector<1x16x16x8xbf16>, vector<1x16x16x8xbf16>, vector<1x16x16x8xbf16>, vector<1x16x16x8xbf16>, vector<1x16x16x8xbf16>, vector<1x16x16x8xbf16> -> vector<1x16x16x72xbf16>
    %33 = vector.shape_cast %32 : vector<1x16x16x72xbf16> to vector<256x72xbf16>
    %c0_42 = arith.constant 0 : index
    %c0_43 = arith.constant 0 : index
    %34 = vector.load %arg5[%c0_42, %c0_43] : memref<72x16xbf16, #tpu.memory_space<vmem>>, vector<72x16xbf16>
    %cst_44 = arith.constant dense<0.000000e+00> : vector<256x16xf32>
    %35 = tpu.matmul %33, %34, %cst_44 {dimension_numbers = #tpu.dot_dimension_numbers<[1], [0], [0], [1], [0, 0, 1, 1], [], []>} : vector<256x72xbf16>, vector<72x16xbf16>, vector<256x16xf32> -> vector<256x16xf32>
    %36 = tpu.concatenate %11, %35 in 1 : vector<256x16xf32>, vector<256x16xf32> -> vector<256x32xf32>
    %c0_45 = arith.constant 0 : index
    %c0_46 = arith.constant 0 : index
    %37 = vector.load %arg6[%c0_45, %c0_46] : memref<1x32xf32, #tpu.memory_space<vmem>>, vector<1x32xf32>
    %38 = vector.broadcast %37 : vector<1x32xf32> to vector<256x32xf32>
    %39 = arith.addf %36, %38 : vector<256x32xf32>
    %cst_47 = arith.constant 0.000000e+00 : f32
    %40 = vector.broadcast %cst_47 : f32 to vector<256x32xf32>
    %41 = arith.maximumf %39, %40 : vector<256x32xf32>
    %42 = vector.shape_cast %41 : vector<256x32xf32> to vector<1x16x16x32xf32>
    %43 = arith.truncf %42 : vector<1x16x16x32xf32> to vector<1x16x16x32xbf16>
    %c0_48 = arith.constant 0 : index
    %c0_49 = arith.constant 0 : index
    %c0_50 = arith.constant 0 : index
    %c0_51 = arith.constant 0 : index
    %44 = vector.load %arg7[%c0_48, %c0_49, %c0_50, %c0_51] : memref<1x16x16x32xbf16, #tpu.memory_space<vmem>>, vector<1x16x16x32xbf16>
    tpu.vector_store %arg7[%c0_48, %c0_49, %c0_50, %c0_51], %43 {strides = array<i32>} : memref<1x16x16x32xbf16, #tpu.memory_space<vmem>>, vector<1x16x16x32xbf16>,
    return
  }
  func.func @transform_0(%arg0: i32) -> (i32, i32, i32, i32) {
    %c0_i32 = arith.constant 0 : i32
    %c0_i32_0 = arith.constant 0 : i32
    %c0_i32_1 = arith.constant 0 : i32
    %c0_i32_2 = arith.constant 0 : i32
    return %arg0, %c0_i32, %c0_i32_0, %c0_i32_1 : i32, i32, i32, i32
  }
  func.func @transform_1(%arg0: i32) -> (i32, i32) {
    %c0_i32 = arith.constant 0 : i32
    %c0_i32_0 = arith.constant 0 : i32
    %c0_i32_1 = arith.constant 0 : i32
    return %c0_i32, %c0_i32_0 : i32, i32
  }
  func.func @transform_2(%arg0: i32) -> (i32, i32) {
    %c0_i32 = arith.constant 0 : i32
    %c0_i32_0 = arith.constant 0 : i32
    %c0_i32_1 = arith.constant 0 : i32
    return %c0_i32, %c0_i32_0 : i32, i32
  }
  func.func @transform_3(%arg0: i32) -> (i32, i32) {
    %c0_i32 = arith.constant 0 : i32
    %c0_i32_0 = arith.constant 0 : i32
    %c0_i32_1 = arith.constant 0 : i32
    return %c0_i32, %c0_i32_0 : i32, i32
  }
  func.func @transform_4(%arg0: i32) -> (i32, i32) {
    %c0_i32 = arith.constant 0 : i32
    %c0_i32_0 = arith.constant 0 : i32
    %c0_i32_1 = arith.constant 0 : i32
    return %c0_i32, %c0_i32_0 : i32, i32
  }
  func.func @transform_5(%arg0: i32) -> (i32, i32) {
    %c0_i32 = arith.constant 0 : i32
    %c0_i32_0 = arith.constant 0 : i32
    %c0_i32_1 = arith.constant 0 : i32
    return %c0_i32, %c0_i32_0 : i32, i32
  }
  func.func @transform_6(%arg0: i32) -> (i32, i32, i32, i32) {
    %c0_i32 = arith.constant 0 : i32
    %c0_i32_0 = arith.constant 0 : i32
    %c0_i32_1 = arith.constant 0 : i32
    %c0_i32_2 = arith.constant 0 : i32
    return %arg0, %c0_i32, %c0_i32_0, %c0_i32_1 : i32, i32, i32, i32
  }
}

</mosaic_0001>

<llo_original>
// kernel: tpu_custom_call.1
$region0: #{tpu_custom_call.1}
  #allocation0 [shape = 'u32[]', space=smem, size = 0x4, offset = 0x4, fixed_abs, tag = 'smem constant byte address 0x4 - core index']
  #allocation1 [shape = 'u32[144,128]{1,0:T(1,128)}', space=vmem, size = 0x12000, scoped, tag = 'internal scratch']
  #allocation2 [shape = 'bf16[1,18,18,8]{3,2,1,0:T(8,128)(2,1)}', space=vmem, size = 0x1b000, scoped, tag = 'scratch operand']
  %s0 = inlined_call_operand.hbm [shape: bf16[2,16,16,4], index: 0, kind: input, shape index: {}]
  %s1 = inlined_call_operand.hbm [shape: bf16[4,8], index: 1, kind: input, shape index: {}]
  %s2 = inlined_call_operand.hbm [shape: f32[1,8], index: 2, kind: input, shape index: {}]
  %s3 = inlined_call_operand.hbm [shape: bf16[8,16], index: 3, kind: input, shape index: {}]
  %s4 = inlined_call_operand.hbm [shape: bf16[72,16], index: 4, kind: input, shape index: {}]
  %s5 = inlined_call_operand.hbm [shape: f32[1,32], index: 5, kind: input, shape index: {}]
  %s6 = inlined_call_operand.hbm [shape: bf16[2,16,16,32], index: 6, kind: output, shape index: {}]
  %s7 = sld [smem:[#allocation0]]
  $region81: #{tpu_custom_call.1} parent=0
    _
  %s9 = ssub.s32 1, %s7
  %s10 = scalar_select 0, %s9, %s7
  $region1: #{tpu_custom_call.1} parent=0
    #allocation3 [shape = 'u8[131072]{0}', space=vmem, size = 0x20000, scoped, tag = 'input window, operand 0']
    #allocation4 [shape = 's32[2]{0}', space=sflag, size = 0x8, scoped, tag = 'scoped memory for tpu_custom_call.1']
    #allocation5 [shape = 's32[2]{0}', space=sflag, size = 0x8, scoped, tag = 'scoped memory for tpu_custom_call.1']
    #allocation6 [shape = 'u8[1024]{0}', space=vmem, size = 0x400, scoped, tag = 'input window, operand 1, single buffered']
    #allocation7 [shape = 's32[1]{0}', space=sflag, size = 0x4, scoped, tag = 'scoped memory for tpu_custom_call.1']
    #allocation8 [shape = 'u8[512]{0}', space=vmem, size = 0x400, scoped, tag = 'input window, operand 2, single buffered']
    #allocation9 [shape = 'u8[2048]{0}', space=vmem, size = 0x800, scoped, tag = 'input window, operand 3, single buffered']
    #allocation10 [shape = 's32[1]{0}', space=sflag, size = 0x4, scoped, tag = 'scoped memory for tpu_custom_call.1']
    #allocation11 [shape = 'u8[18432]{0}', space=vmem, size = 0x4800, scoped, tag = 'input window, operand 4, single buffered']
    #allocation12 [shape = 'u8[512]{0}', space=vmem, size = 0x400, scoped, tag = 'input window, operand 5, single buffered']
    #allocation13 [shape = 's32[1]{0}', space=sflag, size = 0x4, scoped, tag = 'scoped memory for tpu_custom_call.1']
    #allocation14 [shape = 'u8[131072]{0}', space=vmem, size = 0x20000, scoped, tag = 'output window, operand 0']
    %11 = vsyncpa [#allocation4], 0
    %s12 = scalar_lea.sflag [#allocation4], 1
    %13 = vsyncpa %s12, 0
    %14 = vsyncpa [#allocation7], 0
    %15 = vsyncpa [#allocation10], 0
    %16 = vsyncpa [#allocation13], 0
    %17 = vsyncpa [#allocation5], 0
    %s18 = scalar_lea.sflag [#allocation5], 1
    %19 = vsyncpa %s18, 0
    loop: start=0, step=1, limit=4
    $region2: #{tpu_custom_call.1} parent=1 // loop_pre_header
      _
    $region3: #{tpu_custom_call.1} parent=1 // loop_header
      %s21 = sphi 0, %s25
      %p22 = scmp.ge.s32.totalorder %s21, 4
      %s31 = sphi 0, %s33
      %s34 = sphi 0, %s31
      %s35 = sphi 0, %s34
      %s51 = sphi 0, %s35
      %s55 = sphi 0, %s55
      %s57 = sphi 0, %s55
      %s58 = sphi 0, %s57
      %s72 = sphi 0, %s58
      %s76 = sphi 0, %s76
      %s78 = sphi 0, %s76
      %s79 = sphi 0, %s78
      %s93 = sphi 0, %s79
      %s97 = sphi 0, %s97
      %s99 = sphi 0, %s97
      %s100 = sphi 0, %s99
      %s114 = sphi 0, %s100
      %s118 = sphi 0, %s118
      %s120 = sphi 0, %s118
      %s121 = sphi 0, %s120
      %s135 = sphi 0, %s121
      %s139 = sphi 0, %s139
      %s141 = sphi 0, %s139
      %s142 = sphi 0, %s141
      %s156 = sphi 0, %s142
      %s162 = sphi 0, %s164
      %s165 = sphi 0, %s162
      %s166 = sphi 0, %s165
      %s182 = sphi 0, %s166
    $region4: #{tpu_custom_call.1} parent=1 // loop_header_branch
      %24 = sbr.rel (%p22) target = $region8
    $region5: #{tpu_custom_call.1} parent=1 // loop_body
      %s26 = ssub.s32 %s21, 1
      %s27 = ssub.s32 %s21, 2
      %s28 = sadd.s32 %s21, 1
      %s29 = ssub.s32 %s21, %s28
      %p30 = scmp.eq.s32.totalorder %s29, 0
      %s32 = sadd.s32 %s31, 1
      %s33 = scalar_select %p30, %s31, %s32
      %p36 = pneg %p30
      %p37 = scmp.eq.s32.totalorder %s21, 1
      %p38 = por %p36, %p37
      %p39 = scmp.ne.s32.totalorder %s31, %s34
      %p40 = scmp.eq.s32.totalorder %s21, 0
      %p41 = por %p39, %p40
      %p42 = scmp.ne.s32.totalorder %s31, %s34
      %p43 = scmp.eq.s32.totalorder %s26, 1
      %p44 = por %p42, %p43
      %p45 = scmp.ne.s32.totalorder %s34, %s35
      %p46 = scmp.eq.s32.totalorder %s26, 0
      %p47 = por %p45, %p46
      %p48 = scmp.ne.s32.totalorder %s34, %s35
      %p49 = scmp.eq.s32.totalorder %s27, 1
      %p50 = por %p48, %p49
      %p52 = scmp.ne.s32.totalorder %s35, %s51
      %p53 = scmp.eq.s32.totalorder %s27, 0
      %p54 = por %p52, %p53
      %s56 = sadd.s32 %s55, 1
      %p59 = scmp.eq.s32.totalorder %s21, 1
      %p60 = scmp.ne.s32.totalorder %s55, %s57
      %p61 = scmp.eq.s32.totalorder %s21, 0
      %p62 = por %p60, %p61
      %p63 = scmp.ne.s32.totalorder %s55, %s57
      %p64 = scmp.eq.s32.totalorder %s26, 1
      %p65 = por %p63, %p64
      %p66 = scmp.ne.s32.totalorder %s57, %s58
      %p67 = scmp.eq.s32.totalorder %s26, 0
      %p68 = por %p66, %p67
      %p69 = scmp.ne.s32.totalorder %s57, %s58
      %p70 = scmp.eq.s32.totalorder %s27, 1
      %p71 = por %p69, %p70
      %p73 = scmp.ne.s32.totalorder %s58, %s72
      %p74 = scmp.eq.s32.totalorder %s27, 0
      %p75 = por %p73, %p74
      %s77 = sadd.s32 %s76, 1
      %p80 = scmp.eq.s32.totalorder %s21, 1
      %p81 = scmp.ne.s32.totalorder %s76, %s78
      %p82 = scmp.eq.s32.totalorder %s21, 0
      %p83 = por %p81, %p82
      %p84 = scmp.ne.s32.totalorder %s76, %s78
      %p85 = scmp.eq.s32.totalorder %s26, 1
      %p86 = por %p84, %p85
      %p87 = scmp.ne.s32.totalorder %s78, %s79
      %p88 = scmp.eq.s32.totalorder %s26, 0
      %p89 = por %p87, %p88
      %p90 = scmp.ne.s32.totalorder %s78, %s79
      %p91 = scmp.eq.s32.totalorder %s27, 1
      %p92 = por %p90, %p91
      %p94 = scmp.ne.s32.totalorder %s79, %s93
      %p95 = scmp.eq.s32.totalorder %s27, 0
      %p96 = por %p94, %p95
      %s98 = sadd.s32 %s97, 1
      %p101 = scmp.eq.s32.totalorder %s21, 1
      %p102 = scmp.ne.s32.totalorder %s97, %s99
      %p103 = scmp.eq.s32.totalorder %s21, 0
      %p104 = por %p102, %p103
      %p105 = scmp.ne.s32.totalorder %s97, %s99
      %p106 = scmp.eq.s32.totalorder %s26, 1
      %p107 = por %p105, %p106
      %p108 = scmp.ne.s32.totalorder %s99, %s100
      %p109 = scmp.eq.s32.totalorder %s26, 0
      %p110 = por %p108, %p109
      %p111 = scmp.ne.s32.totalorder %s99, %s100
      %p112 = scmp.eq.s32.totalorder %s27, 1
      %p113 = por %p111, %p112
      %p115 = scmp.ne.s32.totalorder %s100, %s114
      %p116 = scmp.eq.s32.totalorder %s27, 0
      %p117 = por %p115, %p116
      %s119 = sadd.s32 %s118, 1
      %p122 = scmp.eq.s32.totalorder %s21, 1
      %p123 = scmp.ne.s32.totalorder %s118, %s120
      %p124 = scmp.eq.s32.totalorder %s21, 0
      %p125 = por %p123, %p124
      %p126 = scmp.ne.s32.totalorder %s118, %s120
      %p127 = scmp.eq.s32.totalorder %s26, 1
      %p128 = por %p126, %p127
      %p129 = scmp.ne.s32.totalorder %s120, %s121
      %p130 = scmp.eq.s32.totalorder %s26, 0
      %p131 = por %p129, %p130
      %p132 = scmp.ne.s32.totalorder %s120, %s121
      %p133 = scmp.eq.s32.totalorder %s27, 1
      %p134 = por %p132, %p133
      %p136 = scmp.ne.s32.totalorder %s121, %s135
      %p137 = scmp.eq.s32.totalorder %s27, 0
      %p138 = por %p136, %p137
      %s140 = sadd.s32 %s139, 1
      %p143 = scmp.eq.s32.totalorder %s21, 1
      %p144 = scmp.ne.s32.totalorder %s139, %s141
      %p145 = scmp.eq.s32.totalorder %s21, 0
      %p146 = por %p144, %p145
      %p147 = scmp.ne.s32.totalorder %s139, %s141
      %p148 = scmp.eq.s32.totalorder %s26, 1
      %p149 = por %p147, %p148
      %p150 = scmp.ne.s32.totalorder %s141, %s142
      %p151 = scmp.eq.s32.totalorder %s26, 0
      %p152 = por %p150, %p151
      %p153 = scmp.ne.s32.totalorder %s141, %s142
      %p154 = scmp.eq.s32.totalorder %s27, 1
      %p155 = por %p153, %p154
      %p157 = scmp.ne.s32.totalorder %s142, %s156
      %p158 = scmp.eq.s32.totalorder %s27, 0
      %p159 = por %p157, %p158
      %s160 = ssub.s32 %s21, %s28
      %p161 = scmp.eq.s32.totalorder %s160, 0
      %s163 = sadd.s32 %s162, 1
      %s164 = scalar_select %p161, %s162, %s163
      %p167 = pneg %p161
      %p168 = scmp.eq.s32.totalorder %s21, 1
      %p169 = por %p167, %p168
      %p170 = scmp.ne.s32.totalorder %s162, %s165
      %p171 = scmp.eq.s32.totalorder %s21, 0
      %p172 = por %p170, %p171
      %p173 = scmp.ne.s32.totalorder %s162, %s165
      %p174 = scmp.eq.s32.totalorder %s26, 1
      %p175 = por %p173, %p174
      %p176 = scmp.ne.s32.totalorder %s165, %s166
      %p177 = scmp.eq.s32.totalorder %s26, 0
      %p178 = por %p176, %p177
      %p179 = scmp.ne.s32.totalorder %s165, %s166
      %p180 = scmp.eq.s32.totalorder %s27, 1
      %p181 = por %p179, %p180
      %p183 = scmp.ne.s32.totalorder %s166, %s182
      %p184 = scmp.eq.s32.totalorder %s27, 0
      %p185 = por %p183, %p184
      %p186 = scmp.le.s32.totalorder 1, %s21
      %p187 = scmp.lt.s32.totalorder %s21, 3
      %p188 = pnand %p186, %p187
      %p189 = pneg %p188
      // Predicated region
      $region9: #{tpu_custom_call.1} parent=5 // pred_check
        _
      $region10: #{tpu_custom_call.1} parent=5 // pred_check_branch
        %191 = sbr.rel (%p188) target = $region12
      $region11: #{tpu_custom_call.1} parent=5 // pred_region
        %s192 = ssub.s32 %s21, 1
        // Predicated region
        $region13: #{tpu_custom_call.1} parent=11 // pred_check
          %p193 = pneg %p68
        $region14: #{tpu_custom_call.1} parent=11 // pred_check_branch
          %195 = sbr.rel (%p193) target = $region16
        $region15: #{tpu_custom_call.1} parent=11 // pred_region
          %s197 = ssub.s32 32, 32
          %198 = vsyncadd [#allocation7], %s197
          %s200 = sshll.u32 [#allocation6], 4
          %s201 = int_to_ptr.vmem [resolvable:$true] %s200
          %203 = dma.hbm_to_vmem [thread:$0]  %s1, 32, %s201, [#allocation7]
        $region16: #{tpu_custom_call.1} parent=11 // pred_fallthru
          _
        // Predicated region
        $region17: #{tpu_custom_call.1} parent=11 // pred_check
          %p204 = pneg %p89
        $region18: #{tpu_custom_call.1} parent=11 // pred_check_branch
          %206 = sbr.rel (%p204) target = $region20
        $region19: #{tpu_custom_call.1} parent=11 // pred_region
          %s208 = ssub.s32 16, 16
          %209 = vsyncadd [#allocation7], %s208
          %s211 = sshll.u32 [#allocation8], 4
          %s212 = int_to_ptr.vmem [resolvable:$true] %s211
          %214 = dma.hbm_to_vmem [thread:$0]  %s2, 16, %s212, [#allocation7]
        $region20: #{tpu_custom_call.1} parent=11 // pred_fallthru
          _
        // Predicated region
        $region21: #{tpu_custom_call.1} parent=11 // pred_check
          %p215 = pneg %p110
        $region22: #{tpu_custom_call.1} parent=11 // pred_check_branch
          %217 = sbr.rel (%p215) target = $region24
        $region23: #{tpu_custom_call.1} parent=11 // pred_region
          %s219 = ssub.s32 64, 64
          %220 = vsyncadd [#allocation10], %s219
          %s222 = sshll.u32 [#allocation9], 4
          %s223 = int_to_ptr.vmem [resolvable:$true] %s222
          %225 = dma.hbm_to_vmem [thread:$0]  %s3, 64, %s223, [#allocation10]
        $region24: #{tpu_custom_call.1} parent=11 // pred_fallthru
          _
        // Predicated region
        $region25: #{tpu_custom_call.1} parent=11 // pred_check
          %p226 = pneg %p131
        $region26: #{tpu_custom_call.1} parent=11 // pred_check_branch
          %228 = sbr.rel (%p226) target = $region28
        $region27: #{tpu_custom_call.1} parent=11 // pred_region
          %s230 = ssub.s32 576, 576
          %231 = vsyncadd [#allocation10], %s230
          %s232 = sshll.u32 [#allocation11], 4
          %s233 = int_to_ptr.vmem [resolvable:$true] %s232
          %238 = dma.hbm_to_vmem [thread:$0]  %s4, 576, %s233, [#allocation10], 64, 64, 4
        $region28: #{tpu_custom_call.1} parent=11 // pred_fallthru
          _
        // Predicated region
        $region29: #{tpu_custom_call.1} parent=11 // pred_check
          %p239 = pneg %p152
        $region30: #{tpu_custom_call.1} parent=11 // pred_check_branch
          %241 = sbr.rel (%p239) target = $region32
        $region31: #{tpu_custom_call.1} parent=11 // pred_region
          %s243 = ssub.s32 16, 16
          %244 = vsyncadd [#allocation13], %s243
          %s246 = sshll.u32 [#allocation12], 4
          %s247 = int_to_ptr.vmem [resolvable:$true] %s246
          %249 = dma.hbm_to_vmem [thread:$0]  %s5, 16, %s247, [#allocation13]
        $region32: #{tpu_custom_call.1} parent=11 // pred_fallthru
          _
      $region12: #{tpu_custom_call.1} parent=5 // pred_fallthru
        _
      %p250 = scmp.lt.s32.totalorder %s21, 2
      // Predicated region
      $region33: #{tpu_custom_call.1} parent=5 // pred_check
        %p251 = pneg %p250
      $region34: #{tpu_custom_call.1} parent=5 // pred_check_branch
        %253 = sbr.rel (%p251) target = $region36
      $region35: #{tpu_custom_call.1} parent=5 // pred_region
        // Predicated region
        $region37: #{tpu_custom_call.1} parent=35 // pred_check
          %p254 = pneg %p41
        $region38: #{tpu_custom_call.1} parent=35 // pred_check_branch
          %256 = sbr.rel (%p254) target = $region40
        $region39: #{tpu_custom_call.1} parent=35 // pred_region
          %s257 = sand.u32 %s31, 1
          %s258 = scalar_lea.sflag [#allocation4], %s257
          %s259 = sand.u32 %s31, 1
          %s260 = smul.addr %s259, 128
          %s261 = scalar_lea.vmem [#allocation3], %s260
          %s263 = ssub.s32 2048, 2048
          %264 = vsyncadd %s258, %s263
          %s265 = smul.addr %s21, 32
          %s266 = smul.addr %s265, 64
          %s267 = scalar_lea.hbm %s0, %s266
          %s268 = sshll.u32 %s261, 4
          %s269 = int_to_ptr.vmem [resolvable:$true] %s268
          %274 = dma.hbm_to_vmem [thread:$0]  %s267, 2048, %s269, %s258, 64, 64, 4
        $region40: #{tpu_custom_call.1} parent=35 // pred_fallthru
          _
      $region36: #{tpu_custom_call.1} parent=5 // pred_fallthru
        _
      %p275 = scmp.le.s32.totalorder 1, %s21
      %p276 = scmp.lt.s32.totalorder %s21, 3
      %p277 = pnand %p275, %p276
      %p278 = pneg %p277
      // Predicated region
      $region41: #{tpu_custom_call.1} parent=5 // pred_check
        _
      $region42: #{tpu_custom_call.1} parent=5 // pred_check_branch
        %280 = sbr.rel (%p277) target = $region44
      $region43: #{tpu_custom_call.1} parent=5 // pred_region
        %s281 = ssub.s32 %s21, 1
        %s282 = sand.u32 %s34, 1
        %s283 = scalar_lea.sflag [#allocation4], %s282
        %s284 = sand.u32 %s34, 1
        %s285 = smul.addr %s284, 128
        %s286 = scalar_lea.vmem [#allocation3], %s285
        // Predicated region
        $region45: #{tpu_custom_call.1} parent=43 // pred_check
          %p287 = pneg %p47
        $region46: #{tpu_custom_call.1} parent=43 // pred_check_branch
          %289 = sbr.rel (%p287) target = $region48
        $region47: #{tpu_custom_call.1} parent=43 // pred_region
          %290 = dma.done %s283, 2048
        $region48: #{tpu_custom_call.1} parent=43 // pred_fallthru
          _
        // Predicated region
        $region49: #{tpu_custom_call.1} parent=43 // pred_check
          %p291 = pneg %p68
        $region50: #{tpu_custom_call.1} parent=43 // pred_check_branch
          %293 = sbr.rel (%p291) target = $region52
        $region51: #{tpu_custom_call.1} parent=43 // pred_region
          %294 = dma.done [#allocation7], 32
        $region52: #{tpu_custom_call.1} parent=43 // pred_fallthru
          _
        // Predicated region
        $region53: #{tpu_custom_call.1} parent=43 // pred_check
          %p295 = pneg %p89
        $region54: #{tpu_custom_call.1} parent=43 // pred_check_branch
          %297 = sbr.rel (%p295) target = $region56
        $region55: #{tpu_custom_call.1} parent=43 // pred_region
          %298 = dma.done [#allocation7], 16
        $region56: #{tpu_custom_call.1} parent=43 // pred_fallthru
          _
        // Predicated region
        $region57: #{tpu_custom_call.1} parent=43 // pred_check
          %p299 = pneg %p110
        $region58: #{tpu_custom_call.1} parent=43 // pred_check_branch
          %301 = sbr.rel (%p299) target = $region60
        $region59: #{tpu_custom_call.1} parent=43 // pred_region
          %302 = dma.done [#allocation10], 64
        $region60: #{tpu_custom_call.1} parent=43 // pred_fallthru
          _
        // Predicated region
        $region61: #{tpu_custom_call.1} parent=43 // pred_check
          %p303 = pneg %p131
        $region62: #{tpu_custom_call.1} parent=43 // pred_check_branch
          %305 = sbr.rel (%p303) target = $region64
        $region63: #{tpu_custom_call.1} parent=43 // pred_region
          %306 = dma.done [#allocation10], 576
        $region64: #{tpu_custom_call.1} parent=43 // pred_fallthru
          _
        // Predicated region
        $region65: #{tpu_custom_call.1} parent=43 // pred_check
          %p307 = pneg %p152
        $region66: #{tpu_custom_call.1} parent=43 // pred_check_branch
          %309 = sbr.rel (%p307) target = $region68
        $region67: #{tpu_custom_call.1} parent=43 // pred_region
          %310 = dma.done [#allocation13], 16
        $region68: #{tpu_custom_call.1} parent=43 // pred_fallthru
          _
        %s311 = sand.u32 %s34, 1
        %s312 = scalar_lea.sflag [#allocation4], %s311
        %s313 = sand.u32 %s34, 1
        %s314 = smul.addr %s313, 128
        %s315 = scalar_lea.vmem [#allocation3], %s314
        %p316 = pneg %p47
        %p317 = pneg %p44
        %p318 = pneg %p68
        %p319 = pneg %p65
        %p320 = pneg %p89
        %p321 = pneg %p86
        %p322 = pneg %p110
        %p323 = pneg %p107
        %p324 = pneg %p131
        %p325 = pneg %p128
        %p326 = pneg %p152
        %p327 = pneg %p149
        %p328 = pneg %p178
        %p329 = pneg %p175
        %s330 = sand.u32 %s165, 1
        %s331 = scalar_lea.sflag [#allocation5], %s330
        %s332 = sand.u32 %s165, 1
        %s333 = smul.addr %s332, 128
        %s334 = scalar_lea.vmem [#allocation14], %s333
        %v336 = vld [vmem:[%s286] sm:$0xf]
        %v337 = vld [vmem:[%s286 + $0x4] sm:$0xf]
        %v338 = vld [vmem:[%s286 + $0x8] sm:$0xf]
        %v339 = vld [vmem:[%s286 + $0xc] sm:$0xf]
        %v340 = vld [vmem:[%s286 + $0x10] sm:$0xf]
        %v341 = vld [vmem:[%s286 + $0x14] sm:$0xf]
        %v342 = vld [vmem:[%s286 + $0x18] sm:$0xf]
        %v343 = vld [vmem:[%s286 + $0x1c] sm:$0xf]
        %v344 = vld [vmem:[%s286 + $0x20] sm:$0xf]
        %v345 = vld [vmem:[%s286 + $0x24] sm:$0xf]
        %v346 = vld [vmem:[%s286 + $0x28] sm:$0xf]
        %v347 = vld [vmem:[%s286 + $0x2c] sm:$0xf]
        %v348 = vld [vmem:[%s286 + $0x30] sm:$0xf]
        %v349 = vld [vmem:[%s286 + $0x34] sm:$0xf]
        %v350 = vld [vmem:[%s286 + $0x38] sm:$0xf]
        %v351 = vld [vmem:[%s286 + $0x3c] sm:$0xf]
        %v352 = vld [vmem:[%s286 + $0x40] sm:$0xf]
        %v353 = vld [vmem:[%s286 + $0x44] sm:$0xf]
        %v354 = vld [vmem:[%s286 + $0x48] sm:$0xf]
        %v355 = vld [vmem:[%s286 + $0x4c] sm:$0xf]
        %v356 = vld [vmem:[%s286 + $0x50] sm:$0xf]
        %v357 = vld [vmem:[%s286 + $0x54] sm:$0xf]
        %v358 = vld [vmem:[%s286 + $0x58] sm:$0xf]
        %v359 = vld [vmem:[%s286 + $0x5c] sm:$0xf]
        %v360 = vld [vmem:[%s286 + $0x60] sm:$0xf]
        %v361 = vld [vmem:[%s286 + $0x64] sm:$0xf]
        %v362 = vld [vmem:[%s286 + $0x68] sm:$0xf]
        %v363 = vld [vmem:[%s286 + $0x6c] sm:$0xf]
        %v364 = vld [vmem:[%s286 + $0x70] sm:$0xf]
        %v365 = vld [vmem:[%s286 + $0x74] sm:$0xf]
        %v366 = vld [vmem:[%s286 + $0x78] sm:$0xf]
        %v367 = vld [vmem:[%s286 + $0x7c] sm:$0xf]
        %v368 = vld [vmem:[#allocation6] sm:$0x3]
        %v369 = vld [vmem:[#allocation8] sm:$0x1]
        %v371 = vlaneseq
        %v372 = vshrl.u32 %v371, 7
        %v373 = vsub.s32 0, %v372
        %v374 = vrot.slane %v369, %v373
        %v408 = vunpack.c.l.b16 %v336
        %v409 = vunpack.c.l.b16 %v337
        %v410 = vunpack.c.l.b16 %v338
        %v411 = vunpack.c.l.b16 %v339
        %v412 = vunpack.c.l.b16 %v340
        %v413 = vunpack.c.l.b16 %v341
        %v414 = vunpack.c.l.b16 %v342
        %v415 = vunpack.c.l.b16 %v343
        %v416 = vunpack.c.l.b16 %v344
        %v417 = vunpack.c.l.b16 %v345
        %v418 = vunpack.c.l.b16 %v346
        %v419 = vunpack.c.l.b16 %v347
        %v420 = vunpack.c.l.b16 %v348
        %v421 = vunpack.c.l.b16 %v349
        %v422 = vunpack.c.l.b16 %v350
        %v423 = vunpack.c.l.b16 %v351
        %v424 = vunpack.c.l.b16 %v352
        %v425 = vunpack.c.l.b16 %v353
        %v426 = vunpack.c.l.b16 %v354
        %v427 = vunpack.c.l.b16 %v355
        %v428 = vunpack.c.l.b16 %v356
        %v429 = vunpack.c.l.b16 %v357
        %v430 = vunpack.c.l.b16 %v358
        %v431 = vunpack.c.l.b16 %v359
        %v432 = vunpack.c.l.b16 %v360
        %v433 = vunpack.c.l.b16 %v361
        %v434 = vunpack.c.l.b16 %v362
        %v435 = vunpack.c.l.b16 %v363
        %v436 = vunpack.c.l.b16 %v364
        %v437 = vunpack.c.l.b16 %v365
        %v438 = vunpack.c.l.b16 %v366
        %v439 = vunpack.c.l.b16 %v367
        %v440 = vpack.c.b16 %v409, %v408
        %v441 = vpack.c.b16 %v411, %v410
        %v442 = vpack.c.b16 %v413, %v412
        %v443 = vpack.c.b16 %v415, %v414
        %v444 = vpack.c.b16 %v417, %v416
        %v445 = vpack.c.b16 %v419, %v418
        %v446 = vpack.c.b16 %v421, %v420
        %v447 = vpack.c.b16 %v423, %v422
        %v448 = vpack.c.b16 %v425, %v424
        %v449 = vpack.c.b16 %v427, %v426
        %v450 = vpack.c.b16 %v429, %v428
        %v451 = vpack.c.b16 %v431, %v430
        %v452 = vpack.c.b16 %v433, %v432
        %v453 = vpack.c.b16 %v435, %v434
        %v454 = vpack.c.b16 %v437, %v436
        %v455 = vpack.c.b16 %v439, %v438
        %vm456 = vcmask 31744
        %v458 = vsel %vm456, %v440, 0
        %v461 = vsel %vm456, %v441, 0
        %v464 = vsel %vm456, %v442, 0
        %v467 = vsel %vm456, %v443, 0
        %v470 = vsel %vm456, %v444, 0
        %v473 = vsel %vm456, %v445, 0
        %v476 = vsel %vm456, %v446, 0
        %v479 = vsel %vm456, %v447, 0
        %v482 = vsel %vm456, %v448, 0
        %v485 = vsel %vm456, %v449, 0
        %v488 = vsel %vm456, %v450, 0
        %v491 = vsel %vm456, %v451, 0
        %v494 = vsel %vm456, %v452, 0
        %v497 = vsel %vm456, %v453, 0
        %v500 = vsel %vm456, %v454, 0
        %v503 = vsel %vm456, %v455, 0
        %vm505 = vcmask 1041408
        %v507 = vsel %vm505, %v368, 0
        %509 = vmatprep.subr.bf16.mxu0 0
        %510 = vmatpush1.bf16.msra.mxu0 %v507
        %511 = vmatprep.subr.bf16.mxu0 0
        %512 = vmatpush1.bf16.msra.mxu0 0
        %513 = vmatprep.subr.bf16.mxu0 0
        %514 = vmatpush1.bf16.msra.mxu0 0
        %515 = vmatprep.subr.bf16.mxu0 0
        %516 = vmatpush1.bf16.msra.mxu0 0
        %517 = vmatprep.subr.bf16.mxu0 0
        %518 = vmatpush1.bf16.msra.mxu0 0
        %519 = vmatprep.subr.bf16.mxu0 0
        %520 = vmatpush1.bf16.msra.mxu0 0
        %521 = vmatprep.subr.bf16.mxu0 0
        %522 = vmatpush1.bf16.msra.mxu0 0
        %523 = vmatprep.subr.bf16.mxu0 0
        %524 = vmatpush1.bf16.msra.mxu0 0
        %525 = vmatprep.subr.bf16.mxu0 0
        %526 = vmatpush1.bf16.msra.mxu0 0
        %527 = vmatprep.subr.bf16.mxu0 0
        %528 = vmatpush1.bf16.msra.mxu0 0
        %529 = vmatprep.subr.bf16.mxu0 0
        %530 = vmatpush1.bf16.msra.mxu0 0
        %531 = vmatprep.subr.bf16.mxu0 0
        %532 = vmatpush1.bf16.msra.mxu0 0
        %533 = vmatprep.subr.bf16.mxu0 0
        %534 = vmatpush1.bf16.msra.mxu0 0
        %535 = vmatprep.subr.bf16.mxu0 0
        %536 = vmatpush1.bf16.msra.mxu0 0
        %537 = vmatprep.subr.bf16.mxu0 0
        %538 = vmatpush1.bf16.msra.mxu0 0
        %539 = vmatprep.subr.bf16.mxu0 0
        %540 = vmatpush1.bf16.msra.mxu0 0
        %541 = vmatprep.mubr.bf16.mxu0 0
        %542 = vmatmul.mubr.bf16.gmra.mrb[0].mxu0 %v458
        %v543 = vpop.f32.mrb[0].mxu0
        %v544 = vadd.f32 %v374, %v543
        %v545 = vpop.f32.mrb[0].mxu0
        %v546 = vpop.f32.mrb[0].mxu0
        %v547 = vadd.f32 %v374, %v546
        %v548 = vpop.f32.mrb[0].mxu0
        %549 = vmatprep.mubr.bf16.mxu0 0
        %550 = vmatmul.mubr.bf16.gmra.mrb[0].mxu0 %v461
        %v551 = vpop.f32.mrb[0].mxu0
        %v552 = vadd.f32 %v374, %v551
        %v553 = vpop.f32.mrb[0].mxu0
        %v554 = vpop.f32.mrb[0].mxu0
        %v555 = vadd.f32 %v374, %v554
        %v556 = vpop.f32.mrb[0].mxu0
        %557 = vmatprep.mubr.bf16.mxu0 0
        %558 = vmatmul.mubr.bf16.gmra.mrb[0].mxu0 %v464
        %v559 = vpop.f32.mrb[0].mxu0
        %v560 = vadd.f32 %v374, %v559
        %v561 = vpop.f32.mrb[0].mxu0
        %v562 = vpop.f32.mrb[0].mxu0
        %v563 = vadd.f32 %v374, %v562
        %v564 = vpop.f32.mrb[0].mxu0
        %565 = vmatprep.mubr.bf16.mxu0 0
        %566 = vmatmul.mubr.bf16.gmra.mrb[0].mxu0 %v467
        %v567 = vpop.f32.mrb[0].mxu0
        %v568 = vadd.f32 %v374, %v567
        %v569 = vpop.f32.mrb[0].mxu0
        %v570 = vpop.f32.mrb[0].mxu0
        %v571 = vadd.f32 %v374, %v570
        %v572 = vpop.f32.mrb[0].mxu0
        %573 = vmatprep.mubr.bf16.mxu0 0
        %574 = vmatmul.mubr.bf16.gmra.mrb[0].mxu0 %v470
        %v575 = vpop.f32.mrb[0].mxu0
        %v576 = vadd.f32 %v374, %v575
        %v577 = vpop.f32.mrb[0].mxu0
        %v578 = vpop.f32.mrb[0].mxu0
        %v579 = vadd.f32 %v374, %v578
        %v580 = vpop.f32.mrb[0].mxu0
        %581 = vmatprep.mubr.bf16.mxu0 0
        %582 = vmatmul.mubr.bf16.gmra.mrb[0].mxu0 %v473
        %v583 = vpop.f32.mrb[0].mxu0
        %v584 = vadd.f32 %v374, %v583
        %v585 = vpop.f32.mrb[0].mxu0
        %v586 = vpop.f32.mrb[0].mxu0
        %v587 = vadd.f32 %v374, %v586
        %v588 = vpop.f32.mrb[0].mxu0
        %589 = vmatprep.mubr.bf16.mxu0 0
        %590 = vmatmul.mubr.bf16.gmra.mrb[0].mxu0 %v476
        %v591 = vpop.f32.mrb[0].mxu0
        %v592 = vadd.f32 %v374, %v591
        %v593 = vpop.f32.mrb[0].mxu0
        %v594 = vpop.f32.mrb[0].mxu0
        %v595 = vadd.f32 %v374, %v594
        %v596 = vpop.f32.mrb[0].mxu0
        %597 = vmatprep.mubr.bf16.mxu0 0
        %598 = vmatmul.mubr.bf16.gmra.mrb[0].mxu0 %v479
        %v599 = vpop.f32.mrb[0].mxu0
        %v600 = vadd.f32 %v374, %v599
        %v601 = vpop.f32.mrb[0].mxu0
        %v602 = vpop.f32.mrb[0].mxu0
        %v603 = vadd.f32 %v374, %v602
        %v604 = vpop.f32.mrb[0].mxu0
        %605 = vmatprep.mubr.bf16.mxu0 0
        %606 = vmatmul.mubr.bf16.gmra.mrb[0].mxu0 %v482
        %v607 = vpop.f32.mrb[0].mxu0
        %v608 = vadd.f32 %v374, %v607
        %v609 = vpop.f32.mrb[0].mxu0
        %v610 = vpop.f32.mrb[0].mxu0
        %v611 = vadd.f32 %v374, %v610
        %v612 = vpop.f32.mrb[0].mxu0
        %613 = vmatprep.mubr.bf16.mxu0 0
        %614 = vmatmul.mubr.bf16.gmra.mrb[0].mxu0 %v485
        %v615 = vpop.f32.mrb[0].mxu0
        %v616 = vadd.f32 %v374, %v615
        %v617 = vpop.f32.mrb[0].mxu0
        %v618 = vpop.f32.mrb[0].mxu0
        %v619 = vadd.f32 %v374, %v618
        %v620 = vpop.f32.mrb[0].mxu0
        %621 = vmatprep.mubr.bf16.mxu0 0
        %622 = vmatmul.mubr.bf16.gmra.mrb[0].mxu0 %v488
        %v623 = vpop.f32.mrb[0].mxu0
        %v624 = vadd.f32 %v374, %v623
        %v625 = vpop.f32.mrb[0].mxu0
        %v626 = vpop.f32.mrb[0].mxu0
        %v627 = vadd.f32 %v374, %v626
        %v628 = vpop.f32.mrb[0].mxu0
        %629 = vmatprep.mubr.bf16.mxu0 0
        %630 = vmatmul.mubr.bf16.gmra.mrb[0].mxu0 %v491
        %v631 = vpop.f32.mrb[0].mxu0
        %v632 = vadd.f32 %v374, %v631
        %v633 = vpop.f32.mrb[0].mxu0
        %v634 = vpop.f32.mrb[0].mxu0
        %v635 = vadd.f32 %v374, %v634
        %v636 = vpop.f32.mrb[0].mxu0
        %637 = vmatprep.mubr.bf16.mxu0 0
        %638 = vmatmul.mubr.bf16.gmra.mrb[0].mxu0 %v494
        %v639 = vpop.f32.mrb[0].mxu0
        %v640 = vadd.f32 %v374, %v639
        %v641 = vpop.f32.mrb[0].mxu0
        %v642 = vpop.f32.mrb[0].mxu0
        %v643 = vadd.f32 %v374, %v642
        %v644 = vpop.f32.mrb[0].mxu0
        %645 = vmatprep.mubr.bf16.mxu0 0
        %646 = vmatmul.mubr.bf16.gmra.mrb[0].mxu0 %v497
        %v647 = vpop.f32.mrb[0].mxu0
        %v648 = vadd.f32 %v374, %v647
        %v649 = vpop.f32.mrb[0].mxu0
        %v650 = vpop.f32.mrb[0].mxu0
        %v651 = vadd.f32 %v374, %v650
        %v652 = vpop.f32.mrb[0].mxu0
        %653 = vmatprep.mubr.bf16.mxu0 0
        %654 = vmatmul.mubr.bf16.gmra.mrb[0].mxu0 %v500
        %v655 = vpop.f32.mrb[0].mxu0
        %v656 = vadd.f32 %v374, %v655
        %v657 = vpop.f32.mrb[0].mxu0
        %v658 = vpop.f32.mrb[0].mxu0
        %v659 = vadd.f32 %v374, %v658
        %v660 = vpop.f32.mrb[0].mxu0
        %661 = vmatprep.mubr.bf16.mxu0 0
        %662 = vmatmul.mubr.bf16.gmra.mrb[0].mxu0 %v503
        %v663 = vpop.f32.mrb[0].mxu0
        %v664 = vadd.f32 %v374, %v663
        %v665 = vpop.f32.mrb[0].mxu0
        %v666 = vpop.f32.mrb[0].mxu0
        %v667 = vadd.f32 %v374, %v666
        %v668 = vpop.f32.mrb[0].mxu0
        %669 = vdwg.mxu0
        %v670 = vmax.f32 %v544, 0.0
        %v671 = vmax.f32 %v547, 0.0
        %v672 = vmax.f32 %v552, 0.0
        %v673 = vmax.f32 %v555, 0.0
        %v674 = vmax.f32 %v560, 0.0
        %v675 = vmax.f32 %v563, 0.0
        %v676 = vmax.f32 %v568, 0.0
        %v677 = vmax.f32 %v571, 0.0
        %v678 = vmax.f32 %v576, 0.0
        %v679 = vmax.f32 %v579, 0.0
        %v680 = vmax.f32 %v584, 0.0
        %v681 = vmax.f32 %v587, 0.0
        %v682 = vmax.f32 %v592, 0.0
        %v683 = vmax.f32 %v595, 0.0
        %v684 = vmax.f32 %v600, 0.0
        %v685 = vmax.f32 %v603, 0.0
        %v686 = vmax.f32 %v608, 0.0
        %v687 = vmax.f32 %v611, 0.0
        %v688 = vmax.f32 %v616, 0.0
        %v689 = vmax.f32 %v619, 0.0
        %v690 = vmax.f32 %v624, 0.0
        %v691 = vmax.f32 %v627, 0.0
        %v692 = vmax.f32 %v632, 0.0
        %v693 = vmax.f32 %v635, 0.0
        %v694 = vmax.f32 %v640, 0.0
        %v695 = vmax.f32 %v643, 0.0
        %v696 = vmax.f32 %v648, 0.0
        %v697 = vmax.f32 %v651, 0.0
        %v698 = vmax.f32 %v656, 0.0
        %v699 = vmax.f32 %v659, 0.0
        %v700 = vmax.f32 %v664, 0.0
        %v701 = vmax.f32 %v667, 0.0
        %v702 = vpack.c.bf16 %v671, %v670
        %v703 = vpack.c.bf16 %v673, %v672
        %v704 = vpack.c.bf16 %v675, %v674
        %v705 = vpack.c.bf16 %v677, %v676
        %v706 = vpack.c.bf16 %v679, %v678
        %v707 = vpack.c.bf16 %v681, %v680
        %v708 = vpack.c.bf16 %v683, %v682
        %v709 = vpack.c.bf16 %v685, %v684
        %v710 = vpack.c.bf16 %v687, %v686
        %v711 = vpack.c.bf16 %v689, %v688
        %v712 = vpack.c.bf16 %v691, %v690
        %v713 = vpack.c.bf16 %v693, %v692
        %v714 = vpack.c.bf16 %v695, %v694
        %v715 = vpack.c.bf16 %v697, %v696
        %v716 = vpack.c.bf16 %v699, %v698
        %v717 = vpack.c.bf16 %v701, %v700
        %v718 = vld [vmem:[#allocation9] sm:$0xf]
        %vm719 = vcmask 64512
        %v721 = vsel %vm719, %v702, 0
        %v724 = vsel %vm719, %v703, 0
        %v727 = vsel %vm719, %v704, 0
        %v730 = vsel %vm719, %v705, 0
        %v733 = vsel %vm719, %v706, 0
        %v736 = vsel %vm719, %v707, 0
        %v739 = vsel %vm719, %v708, 0
        %v742 = vsel %vm719, %v709, 0
        %v745 = vsel %vm719, %v710, 0
        %v748 = vsel %vm719, %v711, 0
        %v751 = vsel %vm719, %v712, 0
        %v754 = vsel %vm719, %v713, 0
        %v757 = vsel %vm719, %v714, 0
        %v760 = vsel %vm719, %v715, 0
        %v763 = vsel %vm719, %v716, 0
        %v766 = vsel %vm719, %v717, 0
        %vm768 = vcmask 1043456
        %v770 = vsel %vm768, %v718, 0
        %772 = vmatprep.subr.bf16.mxu0 0
        %773 = vmatpush1.bf16.msra.mxu0 %v770
        %774 = vmatprep.subr.bf16.mxu0 0
        %775 = vmatpush1.bf16.msra.mxu0 0
        %776 = vmatprep.subr.bf16.mxu0 0
        %777 = vmatpush1.bf16.msra.mxu0 0
        %778 = vmatprep.subr.bf16.mxu0 0
        %779 = vmatpush1.bf16.msra.mxu0 0
        %780 = vmatprep.subr.bf16.mxu0 0
        %781 = vmatpush1.bf16.msra.mxu0 0
        %782 = vmatprep.subr.bf16.mxu0 0
        %783 = vmatpush1.bf16.msra.mxu0 0
        %784 = vmatprep.subr.bf16.mxu0 0
        %785 = vmatpush1.bf16.msra.mxu0 0
        %786 = vmatprep.subr.bf16.mxu0 0
        %787 = vmatpush1.bf16.msra.mxu0 0
        %788 = vmatprep.subr.bf16.mxu0 0
        %789 = vmatpush1.bf16.msra.mxu0 0
        %790 = vmatprep.subr.bf16.mxu0 0
        %791 = vmatpush1.bf16.msra.mxu0 0
        %792 = vmatprep.subr.bf16.mxu0 0
        %793 = vmatpush1.bf16.msra.mxu0 0
        %794 = vmatprep.subr.bf16.mxu0 0
        %795 = vmatpush1.bf16.msra.mxu0 0
        %796 = vmatprep.subr.bf16.mxu0 0
        %797 = vmatpush1.bf16.msra.mxu0 0
        %798 = vmatprep.subr.bf16.mxu0 0
        %799 = vmatpush1.bf16.msra.mxu0 0
        %800 = vmatprep.subr.bf16.mxu0 0
        %801 = vmatpush1.bf16.msra.mxu0 0
        %802 = vmatprep.subr.bf16.mxu0 0
        %803 = vmatpush1.bf16.msra.mxu0 0
        %804 = vmatprep.mubr.bf16.mxu0 0
        %805 = vmatmul.mubr.bf16.gmra.mrb[0].mxu0 %v721
        %v806 = vpop.f32.mrb[0].mxu0
        %v807 = vadd.f32 0.0, %v806
        %v808 = vpop.f32.mrb[0].mxu0
        %v809 = vpop.f32.mrb[0].mxu0
        %v810 = vadd.f32 0.0, %v809
        %v811 = vpop.f32.mrb[0].mxu0
        %812 = vmatprep.mubr.bf16.mxu0 0
        %813 = vmatmul.mubr.bf16.gmra.mrb[0].mxu0 %v724
        %v814 = vpop.f32.mrb[0].mxu0
        %v815 = vadd.f32 0.0, %v814
        %v816 = vpop.f32.mrb[0].mxu0
        %v817 = vpop.f32.mrb[0].mxu0
        %v818 = vadd.f32 0.0, %v817
        %v819 = vpop.f32.mrb[0].mxu0
        %820 = vmatprep.mubr.bf16.mxu0 0
        %821 = vmatmul.mubr.bf16.gmra.mrb[0].mxu0 %v727
        %v822 = vpop.f32.mrb[0].mxu0
        %v823 = vadd.f32 0.0, %v822
        %v824 = vpop.f32.mrb[0].mxu0
        %v825 = vpop.f32.mrb[0].mxu0
        %v826 = vadd.f32 0.0, %v825
        %v827 = vpop.f32.mrb[0].mxu0
        %828 = vmatprep.mubr.bf16.mxu0 0
        %829 = vmatmul.mubr.bf16.gmra.mrb[0].mxu0 %v730
        %v830 = vpop.f32.mrb[0].mxu0
        %v831 = vadd.f32 0.0, %v830
        %v832 = vpop.f32.mrb[0].mxu0
        %v833 = vpop.f32.mrb[0].mxu0
        %v834 = vadd.f32 0.0, %v833
        %v835 = vpop.f32.mrb[0].mxu0
        %836 = vmatprep.mubr.bf16.mxu0 0
        %837 = vmatmul.mubr.bf16.gmra.mrb[0].mxu0 %v733
        %v838 = vpop.f32.mrb[0].mxu0
        %v839 = vadd.f32 0.0, %v838
        %v840 = vpop.f32.mrb[0].mxu0
        %v841 = vpop.f32.mrb[0].mxu0
        %v842 = vadd.f32 0.0, %v841
        %v843 = vpop.f32.mrb[0].mxu0
        %844 = vmatprep.mubr.bf16.mxu0 0
        %845 = vmatmul.mubr.bf16.gmra.mrb[0].mxu0 %v736
        %v846 = vpop.f32.mrb[0].mxu0
        %v847 = vadd.f32 0.0, %v846
        %v848 = vpop.f32.mrb[0].mxu0
        %v849 = vpop.f32.mrb[0].mxu0
        %v850 = vadd.f32 0.0, %v849
        %v851 = vpop.f32.mrb[0].mxu0
        %852 = vmatprep.mubr.bf16.mxu0 0
        %853 = vmatmul.mubr.bf16.gmra.mrb[0].mxu0 %v739
        %v854 = vpop.f32.mrb[0].mxu0
        %v855 = vadd.f32 0.0, %v854
        %v856 = vpop.f32.mrb[0].mxu0
        %v857 = vpop.f32.mrb[0].mxu0
        %v858 = vadd.f32 0.0, %v857
        %v859 = vpop.f32.mrb[0].mxu0
        %860 = vmatprep.mubr.bf16.mxu0 0
        %861 = vmatmul.mubr.bf16.gmra.mrb[0].mxu0 %v742
        %v862 = vpop.f32.mrb[0].mxu0
        %v863 = vadd.f32 0.0, %v862
        %v864 = vpop.f32.mrb[0].mxu0
        %v865 = vpop.f32.mrb[0].mxu0
        %v866 = vadd.f32 0.0, %v865
        %v867 = vpop.f32.mrb[0].mxu0
        %868 = vmatprep.mubr.bf16.mxu0 0
        %869 = vmatmul.mubr.bf16.gmra.mrb[0].mxu0 %v745
        %v870 = vpop.f32.mrb[0].mxu0
        %v871 = vadd.f32 0.0, %v870
        %v872 = vpop.f32.mrb[0].mxu0
        %v873 = vpop.f32.mrb[0].mxu0
        %v874 = vadd.f32 0.0, %v873
        %v875 = vpop.f32.mrb[0].mxu0
        %876 = vmatprep.mubr.bf16.mxu0 0
        %877 = vmatmul.mubr.bf16.gmra.mrb[0].mxu0 %v748
        %v878 = vpop.f32.mrb[0].mxu0
        %v879 = vadd.f32 0.0, %v878
        %v880 = vpop.f32.mrb[0].mxu0
        %v881 = vpop.f32.mrb[0].mxu0
        %v882 = vadd.f32 0.0, %v881
        %v883 = vpop.f32.mrb[0].mxu0
        %884 = vmatprep.mubr.bf16.mxu0 0
        %885 = vmatmul.mubr.bf16.gmra.mrb[0].mxu0 %v751
        %v886 = vpop.f32.mrb[0].mxu0
        %v887 = vadd.f32 0.0, %v886
        %v888 = vpop.f32.mrb[0].mxu0
        %v889 = vpop.f32.mrb[0].mxu0
        %v890 = vadd.f32 0.0, %v889
        %v891 = vpop.f32.mrb[0].mxu0
        %892 = vmatprep.mubr.bf16.mxu0 0
        %893 = vmatmul.mubr.bf16.gmra.mrb[0].mxu0 %v754
        %v894 = vpop.f32.mrb[0].mxu0
        %v895 = vadd.f32 0.0, %v894
        %v896 = vpop.f32.mrb[0].mxu0
        %v897 = vpop.f32.mrb[0].mxu0
        %v898 = vadd.f32 0.0, %v897
        %v899 = vpop.f32.mrb[0].mxu0
        %900 = vmatprep.mubr.bf16.mxu0 0
        %901 = vmatmul.mubr.bf16.gmra.mrb[0].mxu0 %v757
        %v902 = vpop.f32.mrb[0].mxu0
        %v903 = vadd.f32 0.0, %v902
        %v904 = vpop.f32.mrb[0].mxu0
        %v905 = vpop.f32.mrb[0].mxu0
        %v906 = vadd.f32 0.0, %v905
        %v907 = vpop.f32.mrb[0].mxu0
        %908 = vmatprep.mubr.bf16.mxu0 0
        %909 = vmatmul.mubr.bf16.gmra.mrb[0].mxu0 %v760
        %v910 = vpop.f32.mrb[0].mxu0
        %v911 = vadd.f32 0.0, %v910
        %v912 = vpop.f32.mrb[0].mxu0
        %v913 = vpop.f32.mrb[0].mxu0
        %v914 = vadd.f32 0.0, %v913
        %v915 = vpop.f32.mrb[0].mxu0
        %916 = vmatprep.mubr.bf16.mxu0 0
        %917 = vmatmul.mubr.bf16.gmra.mrb[0].mxu0 %v763
        %v918 = vpop.f32.mrb[0].mxu0
        %v919 = vadd.f32 0.0, %v918
        %v920 = vpop.f32.mrb[0].mxu0
        %v921 = vpop.f32.mrb[0].mxu0
        %v922 = vadd.f32 0.0, %v921
        %v923 = vpop.f32.mrb[0].mxu0
        %924 = vmatprep.mubr.bf16.mxu0 0
        %925 = vmatmul.mubr.bf16.gmra.mrb[0].mxu0 %v766
        %v926 = vpop.f32.mrb[0].mxu0
        %v927 = vadd.f32 0.0, %v926
        %v928 = vpop.f32.mrb[0].mxu0
        %v929 = vpop.f32.mrb[0].mxu0
        %v930 = vadd.f32 0.0, %v929
        %v931 = vpop.f32.mrb[0].mxu0
        %932 = vdwg.mxu0
        %vm933 = vcmask 60416
        %934 = vst.msk [vmem:[#allocation2] sm:$0xf] %vm933, 0
        %935 = vst.msk [vmem:[#allocation2 + $0x4] sm:$0xf] %vm933, 0
        %vm936 = vcmask 57344
        %937 = vst.msk [vmem:[#allocation2 + $0x8] sm:$0x1] %vm936, 0
        %s938 = scalar_lea.vmem [#allocation2], 204
        %939 = vst.msk [vmem:[%s938] sm:$0xf] %vm933, 0
        %940 = vst.msk [vmem:[%s938 + $0x4] sm:$0xf] %vm933, 0
        %941 = vst.msk [vmem:[%s938 + $0x8] sm:$0x1] %vm936, 0
        %s942 = scalar_lea.vmem [#allocation2], 12
        %vm943 = vcmask 57344
        %vm944 = vsmask.f32 256
        %vm945 = vmand %vm943, %vm944
        %v946 = vld [vmem:[%s942] sm:$0x1]
        %v947 = vsel %vm945, 0, %v946
        %948 = vst [vmem:[%s942] sm:$0x1] %v947
        %v949 = vld [vmem:[%s942 + $0xc] sm:$0x1]
        %v950 = vsel %vm945, 0, %v949
        %951 = vst [vmem:[%s942 + $0xc] sm:$0x1] %v950
        %v952 = vld [vmem:[%s942 + $0x18] sm:$0x1]
        %v953 = vsel %vm945, 0, %v952
        %954 = vst [vmem:[%s942 + $0x18] sm:$0x1] %v953
        %v955 = vld [vmem:[%s942 + $0x24] sm:$0x1]
        %v956 = vsel %vm945, 0, %v955
        %957 = vst [vmem:[%s942 + $0x24] sm:$0x1] %v956
        %v958 = vld [vmem:[%s942 + $0x30] sm:$0x1]
        %v959 = vsel %vm945, 0, %v958
        %960 = vst [vmem:[%s942 + $0x30] sm:$0x1] %v959
        %v961 = vld [vmem:[%s942 + $0x3c] sm:$0x1]
        %v962 = vsel %vm945, 0, %v961
        %963 = vst [vmem:[%s942 + $0x3c] sm:$0x1] %v962
        %v964 = vld [vmem:[%s942 + $0x48] sm:$0x1]
        %v965 = vsel %vm945, 0, %v964
        %966 = vst [vmem:[%s942 + $0x48] sm:$0x1] %v965
        %v967 = vld [vmem:[%s942 + $0x54] sm:$0x1]
        %v968 = vsel %vm945, 0, %v967
        %969 = vst [vmem:[%s942 + $0x54] sm:$0x1] %v968
        %v970 = vld [vmem:[%s942 + $0x60] sm:$0x1]
        %v971 = vsel %vm945, 0, %v970
        %972 = vst [vmem:[%s942 + $0x60] sm:$0x1] %v971
        %v973 = vld [vmem:[%s942 + $0x6c] sm:$0x1]
        %v974 = vsel %vm945, 0, %v973
        %975 = vst [vmem:[%s942 + $0x6c] sm:$0x1] %v974
        %v976 = vld [vmem:[%s942 + $0x78] sm:$0x1]
        %v977 = vsel %vm945, 0, %v976
        %978 = vst [vmem:[%s942 + $0x78] sm:$0x1] %v977
        %v979 = vld [vmem:[%s942 + $0x84] sm:$0x1]
        %v980 = vsel %vm945, 0, %v979
        %981 = vst [vmem:[%s942 + $0x84] sm:$0x1] %v980
        %v982 = vld [vmem:[%s942 + $0x90] sm:$0x1]
        %v983 = vsel %vm945, 0, %v982
        %984 = vst [vmem:[%s942 + $0x90] sm:$0x1] %v983
        %v985 = vld [vmem:[%s942 + $0x9c] sm:$0x1]
        %v986 = vsel %vm945, 0, %v985
        %987 = vst [vmem:[%s942 + $0x9c] sm:$0x1] %v986
        %v988 = vld [vmem:[%s942 + $0xa8] sm:$0x1]
        %v989 = vsel %vm945, 0, %v988
        %990 = vst [vmem:[%s942 + $0xa8] sm:$0x1] %v989
        %v991 = vld [vmem:[%s942 + $0xb4] sm:$0x1]
        %v992 = vsel %vm945, 0, %v991
        %993 = vst [vmem:[%s942 + $0xb4] sm:$0x1] %v992
        %vm994 = vsmask.f32 7938
        %vm995 = vmand %vm943, %vm994
        %v996 = vld [vmem:[%s942 + $0x8] sm:$0x1]
        %v997 = vsel %vm995, 0, %v996
        %998 = vst [vmem:[%s942 + $0x8] sm:$0x1] %v997
        %v999 = vld [vmem:[%s942 + $0x14] sm:$0x1]
        %v1000 = vsel %vm995, 0, %v999
        %1001 = vst [vmem:[%s942 + $0x14] sm:$0x1] %v1000
        %v1002 = vld [vmem:[%s942 + $0x20] sm:$0x1]
        %v1003 = vsel %vm995, 0, %v1002
        %1004 = vst [vmem:[%s942 + $0x20] sm:$0x1] %v1003
        %v1005 = vld [vmem:[%s942 + $0x2c] sm:$0x1]
        %v1006 = vsel %vm995, 0, %v1005
        %1007 = vst [vmem:[%s942 + $0x2c] sm:$0x1] %v1006
        %v1008 = vld [vmem:[%s942 + $0x38] sm:$0x1]
        %v1009 = vsel %vm995, 0, %v1008
        %1010 = vst [vmem:[%s942 + $0x38] sm:$0x1] %v1009
        %v1011 = vld [vmem:[%s942 + $0x44] sm:$0x1]
        %v1012 = vsel %vm995, 0, %v1011
        %1013 = vst [vmem:[%s942 + $0x44] sm:$0x1] %v1012
        %v1014 = vld [vmem:[%s942 + $0x50] sm:$0x1]
        %v1015 = vsel %vm995, 0, %v1014
        %1016 = vst [vmem:[%s942 + $0x50] sm:$0x1] %v1015
        %v1017 = vld [vmem:[%s942 + $0x5c] sm:$0x1]
        %v1018 = vsel %vm995, 0, %v1017
        %1019 = vst [vmem:[%s942 + $0x5c] sm:$0x1] %v1018
        %v1020 = vld [vmem:[%s942 + $0x68] sm:$0x1]
        %v1021 = vsel %vm995, 0, %v1020
        %1022 = vst [vmem:[%s942 + $0x68] sm:$0x1] %v1021
        %v1023 = vld [vmem:[%s942 + $0x74] sm:$0x1]
        %v1024 = vsel %vm995, 0, %v1023
        %1025 = vst [vmem:[%s942 + $0x74] sm:$0x1] %v1024
        %v1026 = vld [vmem:[%s942 + $0x80] sm:$0x1]
        %v1027 = vsel %vm995, 0, %v1026
        %1028 = vst [vmem:[%s942 + $0x80] sm:$0x1] %v1027
        %v1029 = vld [vmem:[%s942 + $0x8c] sm:$0x1]
        %v1030 = vsel %vm995, 0, %v1029
        %1031 = vst [vmem:[%s942 + $0x8c] sm:$0x1] %v1030
        %v1032 = vld [vmem:[%s942 + $0x98] sm:$0x1]
        %v1033 = vsel %vm995, 0, %v1032
        %1034 = vst [vmem:[%s942 + $0x98] sm:$0x1] %v1033
        %v1035 = vld [vmem:[%s942 + $0xa4] sm:$0x1]
        %v1036 = vsel %vm995, 0, %v1035
        %1037 = vst [vmem:[%s942 + $0xa4] sm:$0x1] %v1036
        %v1038 = vld [vmem:[%s942 + $0xb0] sm:$0x1]
        %v1039 = vsel %vm995, 0, %v1038
        %1040 = vst [vmem:[%s942 + $0xb0] sm:$0x1] %v1039
        %v1041 = vld [vmem:[%s942 + $0xbc] sm:$0x1]
        %v1042 = vsel %vm995, 0, %v1041
        %1043 = vst [vmem:[%s942 + $0xbc] sm:$0x1] %v1042
        %v1060 = vunpack.c.l.b16 %v702
        %v1061 = vunpack.c.h.b16 %v702
        %v1062 = vunpack.c.l.b16 %v703
        %v1063 = vunpack.c.h.b16 %v703
        %v1064 = vunpack.c.l.b16 %v704
        %v1065 = vunpack.c.h.b16 %v704
        %v1066 = vunpack.c.l.b16 %v705
        %v1067 = vunpack.c.h.b16 %v705
        %v1068 = vunpack.c.l.b16 %v706
        %v1069 = vunpack.c.h.b16 %v706
        %v1070 = vunpack.c.l.b16 %v707
        %v1071 = vunpack.c.h.b16 %v707
        %v1072 = vunpack.c.l.b16 %v708
        %v1073 = vunpack.c.h.b16 %v708
        %v1074 = vunpack.c.l.b16 %v709
        %v1075 = vunpack.c.h.b16 %v709
        %v1076 = vunpack.c.l.b16 %v710
        %v1077 = vunpack.c.h.b16 %v710
        %v1078 = vunpack.c.l.b16 %v711
        %v1079 = vunpack.c.h.b16 %v711
        %v1080 = vunpack.c.l.b16 %v712
        %v1081 = vunpack.c.h.b16 %v712
        %v1082 = vunpack.c.l.b16 %v713
        %v1083 = vunpack.c.h.b16 %v713
        %v1084 = vunpack.c.l.b16 %v714
        %v1085 = vunpack.c.h.b16 %v714
        %v1086 = vunpack.c.l.b16 %v715
        %v1087 = vunpack.c.h.b16 %v715
        %v1088 = vunpack.c.l.b16 %v716
        %v1089 = vunpack.c.h.b16 %v716
        %v1090 = vunpack.c.l.b16 %v717
        %v1091 = vunpack.c.h.b16 %v717
        %v1092 = vpack.c.b16 %v1060, %v1060
        %v1093 = vpack.c.b16 %v1061, %v1061
        %v1094 = vpack.c.b16 %v1062, %v1062
        %v1095 = vpack.c.b16 %v1063, %v1063
        %v1096 = vpack.c.b16 %v1064, %v1064
        %v1097 = vpack.c.b16 %v1065, %v1065
        %v1098 = vpack.c.b16 %v1066, %v1066
        %v1099 = vpack.c.b16 %v1067, %v1067
        %v1100 = vpack.c.b16 %v1068, %v1068
        %v1101 = vpack.c.b16 %v1069, %v1069
        %v1102 = vpack.c.b16 %v1070, %v1070
        %v1103 = vpack.c.b16 %v1071, %v1071
        %v1104 = vpack.c.b16 %v1072, %v1072
        %v1105 = vpack.c.b16 %v1073, %v1073
        %v1106 = vpack.c.b16 %v1074, %v1074
        %v1107 = vpack.c.b16 %v1075, %v1075
        %v1108 = vpack.c.b16 %v1076, %v1076
        %v1109 = vpack.c.b16 %v1077, %v1077
        %v1110 = vpack.c.b16 %v1078, %v1078
        %v1111 = vpack.c.b16 %v1079, %v1079
        %v1112 = vpack.c.b16 %v1080, %v1080
        %v1113 = vpack.c.b16 %v1081, %v1081
        %v1114 = vpack.c.b16 %v1082, %v1082
        %v1115 = vpack.c.b16 %v1083, %v1083
        %v1116 = vpack.c.b16 %v1084, %v1084
        %v1117 = vpack.c.b16 %v1085, %v1085
        %v1118 = vpack.c.b16 %v1086, %v1086
        %v1119 = vpack.c.b16 %v1087, %v1087
        %v1120 = vpack.c.b16 %v1088, %v1088
        %v1121 = vpack.c.b16 %v1089, %v1089
        %v1122 = vpack.c.b16 %v1090, %v1090
        %v1123 = vpack.c.b16 %v1091, %v1091
        %vm1124 = vsmask.f32 4368
        %vm1125 = vmor %vm944, %vm1124
        %v1127 = vshrl.u32 %v1092, 16
        %v1129 = vrot.slane %v1127, 7
        %v1130 = vshll.u32 %v1092, 16
        %v1132 = vor.u32 %v1129, %v1130
        %v1133 = vrot.slane %v1129, 4
        %v1135 = vshrl.u32 %v1093, 16
        %v1137 = vrot.slane %v1135, 7
        %v1138 = vshll.u32 %v1093, 16
        %v1140 = vor.u32 %v1137, %v1138
        %v1141 = vsel %vm1125, %v1133, %v1140
        %v1142 = vrot.slane %v1137, 4
        %v1144 = vshrl.u32 %v1094, 16
        %v1146 = vrot.slane %v1144, 7
        %v1147 = vshll.u32 %v1094, 16
        %v1149 = vor.u32 %v1146, %v1147
        %v1150 = vrot.slane %v1146, 4
        %v1152 = vshrl.u32 %v1095, 16
        %v1154 = vrot.slane %v1152, 7
        %v1155 = vshll.u32 %v1095, 16
        %v1157 = vor.u32 %v1154, %v1155
        %v1158 = vsel %vm1125, %v1150, %v1157
        %v1159 = vrot.slane %v1154, 4
        %v1161 = vshrl.u32 %v1096, 16
        %v1163 = vrot.slane %v1161, 7
        %v1164 = vshll.u32 %v1096, 16
        %v1166 = vor.u32 %v1163, %v1164
        %v1167 = vrot.slane %v1163, 4
        %v1169 = vshrl.u32 %v1097, 16
        %v1171 = vrot.slane %v1169, 7
        %v1172 = vshll.u32 %v1097, 16
        %v1174 = vor.u32 %v1171, %v1172
        %v1175 = vsel %vm1125, %v1167, %v1174
        %v1176 = vrot.slane %v1171, 4
        %v1178 = vshrl.u32 %v1098, 16
        %v1180 = vrot.slane %v1178, 7
        %v1181 = vshll.u32 %v1098, 16
        %v1183 = vor.u32 %v1180, %v1181
        %v1184 = vrot.slane %v1180, 4
        %v1186 = vshrl.u32 %v1099, 16
        %v1188 = vrot.slane %v1186, 7
        %v1189 = vshll.u32 %v1099, 16
        %v1191 = vor.u32 %v1188, %v1189
        %v1192 = vsel %vm1125, %v1184, %v1191
        %v1193 = vrot.slane %v1188, 4
        %v1195 = vshrl.u32 %v1100, 16
        %v1197 = vrot.slane %v1195, 7
        %v1198 = vshll.u32 %v1100, 16
        %v1200 = vor.u32 %v1197, %v1198
        %v1201 = vrot.slane %v1197, 4
        %v1203 = vshrl.u32 %v1101, 16
        %v1205 = vrot.slane %v1203, 7
        %v1206 = vshll.u32 %v1101, 16
        %v1208 = vor.u32 %v1205, %v1206
        %v1209 = vsel %vm1125, %v1201, %v1208
        %v1210 = vrot.slane %v1205, 4
        %v1212 = vshrl.u32 %v1102, 16
        %v1214 = vrot.slane %v1212, 7
        %v1215 = vshll.u32 %v1102, 16
        %v1217 = vor.u32 %v1214, %v1215
        %v1218 = vrot.slane %v1214, 4
        %v1220 = vshrl.u32 %v1103, 16
        %v1222 = vrot.slane %v1220, 7
        %v1223 = vshll.u32 %v1103, 16
        %v1225 = vor.u32 %v1222, %v1223
        %v1226 = vsel %vm1125, %v1218, %v1225
        %v1227 = vrot.slane %v1222, 4
        %v1229 = vshrl.u32 %v1104, 16
        %v1231 = vrot.slane %v1229, 7
        %v1232 = vshll.u32 %v1104, 16
        %v1234 = vor.u32 %v1231, %v1232
        %v1235 = vrot.slane %v1231, 4
        %v1237 = vshrl.u32 %v1105, 16
        %v1239 = vrot.slane %v1237, 7
        %v1240 = vshll.u32 %v1105, 16
        %v1242 = vor.u32 %v1239, %v1240
        %v1243 = vsel %vm1125, %v1235, %v1242
        %v1244 = vrot.slane %v1239, 4
        %v1246 = vshrl.u32 %v1106, 16
        %v1248 = vrot.slane %v1246, 7
        %v1249 = vshll.u32 %v1106, 16
        %v1251 = vor.u32 %v1248, %v1249
        %v1252 = vrot.slane %v1248, 4
        %v1254 = vshrl.u32 %v1107, 16
        %v1256 = vrot.slane %v1254, 7
        %v1257 = vshll.u32 %v1107, 16
        %v1259 = vor.u32 %v1256, %v1257
        %v1260 = vsel %vm1125, %v1252, %v1259
        %v1261 = vrot.slane %v1256, 4
        %v1263 = vshrl.u32 %v1108, 16
        %v1265 = vrot.slane %v1263, 7
        %v1266 = vshll.u32 %v1108, 16
        %v1268 = vor.u32 %v1265, %v1266
        %v1269 = vrot.slane %v1265, 4
        %v1271 = vshrl.u32 %v1109, 16
        %v1273 = vrot.slane %v1271, 7
        %v1274 = vshll.u32 %v1109, 16
        %v1276 = vor.u32 %v1273, %v1274
        %v1277 = vsel %vm1125, %v1269, %v1276
        %v1278 = vrot.slane %v1273, 4
        %v1280 = vshrl.u32 %v1110, 16
        %v1282 = vrot.slane %v1280, 7
        %v1283 = vshll.u32 %v1110, 16
        %v1285 = vor.u32 %v1282, %v1283
        %v1286 = vrot.slane %v1282, 4
        %v1288 = vshrl.u32 %v1111, 16
        %v1290 = vrot.slane %v1288, 7
        %v1291 = vshll.u32 %v1111, 16
        %v1293 = vor.u32 %v1290, %v1291
        %v1294 = vsel %vm1125, %v1286, %v1293
        %v1295 = vrot.slane %v1290, 4
        %v1297 = vshrl.u32 %v1112, 16
        %v1299 = vrot.slane %v1297, 7
        %v1300 = vshll.u32 %v1112, 16
        %v1302 = vor.u32 %v1299, %v1300
        %v1303 = vrot.slane %v1299, 4
        %v1305 = vshrl.u32 %v1113, 16
        %v1307 = vrot.slane %v1305, 7
        %v1308 = vshll.u32 %v1113, 16
        %v1310 = vor.u32 %v1307, %v1308
        %v1311 = vsel %vm1125, %v1303, %v1310
        %v1312 = vrot.slane %v1307, 4
        %v1314 = vshrl.u32 %v1114, 16
        %v1316 = vrot.slane %v1314, 7
        %v1317 = vshll.u32 %v1114, 16
        %v1319 = vor.u32 %v1316, %v1317
        %v1320 = vrot.slane %v1316, 4
        %v1322 = vshrl.u32 %v1115, 16
        %v1324 = vrot.slane %v1322, 7
        %v1325 = vshll.u32 %v1115, 16
        %v1327 = vor.u32 %v1324, %v1325
        %v1328 = vsel %vm1125, %v1320, %v1327
        %v1329 = vrot.slane %v1324, 4
        %v1331 = vshrl.u32 %v1116, 16
        %v1333 = vrot.slane %v1331, 7
        %v1334 = vshll.u32 %v1116, 16
        %v1336 = vor.u32 %v1333, %v1334
        %v1337 = vrot.slane %v1333, 4
        %v1339 = vshrl.u32 %v1117, 16
        %v1341 = vrot.slane %v1339, 7
        %v1342 = vshll.u32 %v1117, 16
        %v1344 = vor.u32 %v1341, %v1342
        %v1345 = vsel %vm1125, %v1337, %v1344
        %v1346 = vrot.slane %v1341, 4
        %v1348 = vshrl.u32 %v1118, 16
        %v1350 = vrot.slane %v1348, 7
        %v1351 = vshll.u32 %v1118, 16
        %v1353 = vor.u32 %v1350, %v1351
        %v1354 = vrot.slane %v1350, 4
        %v1356 = vshrl.u32 %v1119, 16
        %v1358 = vrot.slane %v1356, 7
        %v1359 = vshll.u32 %v1119, 16
        %v1361 = vor.u32 %v1358, %v1359
        %v1362 = vsel %vm1125, %v1354, %v1361
        %v1363 = vrot.slane %v1358, 4
        %v1365 = vshrl.u32 %v1120, 16
        %v1367 = vrot.slane %v1365, 7
        %v1368 = vshll.u32 %v1120, 16
        %v1370 = vor.u32 %v1367, %v1368
        %v1371 = vrot.slane %v1367, 4
        %v1373 = vshrl.u32 %v1121, 16
        %v1375 = vrot.slane %v1373, 7
        %v1376 = vshll.u32 %v1121, 16
        %v1378 = vor.u32 %v1375, %v1376
        %v1379 = vsel %vm1125, %v1371, %v1378
        %v1380 = vrot.slane %v1375, 4
        %v1382 = vshrl.u32 %v1122, 16
        %v1384 = vrot.slane %v1382, 7
        %v1385 = vshll.u32 %v1122, 16
        %v1387 = vor.u32 %v1384, %v1385
        %v1388 = vrot.slane %v1384, 4
        %v1390 = vshrl.u32 %v1123, 16
        %v1392 = vrot.slane %v1390, 7
        %v1393 = vshll.u32 %v1123, 16
        %v1395 = vor.u32 %v1392, %v1393
        %v1396 = vsel %vm1125, %v1388, %v1395
        %v1397 = vrot.slane %v1392, 4
        %vm1446 = vcmask 60416
        %vm1447 = vmand %vm1446, %vm994
        %v1448 = vld [vmem:[%s942] sm:$0xf]
        %v1449 = vsel %vm1447, %v1132, %v1448
        %1450 = vst [vmem:[%s942] sm:$0xf] %v1449
        %1451 = vst.msk [vmem:[%s942 + $0x4] sm:$0xf] %vm933, %v1141
        %v1452 = vld [vmem:[%s942 + $0x8] sm:$0x1]
        %v1453 = vsel %vm945, %v1142, %v1452
        %1454 = vst [vmem:[%s942 + $0x8] sm:$0x1] %v1453
        %v1455 = vld [vmem:[%s942 + $0xc] sm:$0xf]
        %v1456 = vsel %vm1447, %v1149, %v1455
        %1457 = vst [vmem:[%s942 + $0xc] sm:$0xf] %v1456
        %1458 = vst.msk [vmem:[%s942 + $0x10] sm:$0xf] %vm933, %v1158
        %v1459 = vld [vmem:[%s942 + $0x14] sm:$0x1]
        %v1460 = vsel %vm945, %v1159, %v1459
        %1461 = vst [vmem:[%s942 + $0x14] sm:$0x1] %v1460
        %v1462 = vld [vmem:[%s942 + $0x18] sm:$0xf]
        %v1463 = vsel %vm1447, %v1166, %v1462
        %1464 = vst [vmem:[%s942 + $0x18] sm:$0xf] %v1463
        %1465 = vst.msk [vmem:[%s942 + $0x1c] sm:$0xf] %vm933, %v1175
        %v1466 = vld [vmem:[%s942 + $0x20] sm:$0x1]
        %v1467 = vsel %vm945, %v1176, %v1466
        %1468 = vst [vmem:[%s942 + $0x20] sm:$0x1] %v1467
        %v1469 = vld [vmem:[%s942 + $0x24] sm:$0xf]
        %v1470 = vsel %vm1447, %v1183, %v1469
        %1471 = vst [vmem:[%s942 + $0x24] sm:$0xf] %v1470
        %1472 = vst.msk [vmem:[%s942 + $0x28] sm:$0xf] %vm933, %v1192
        %v1473 = vld [vmem:[%s942 + $0x2c] sm:$0x1]
        %v1474 = vsel %vm945, %v1193, %v1473
        %1475 = vst [vmem:[%s942 + $0x2c] sm:$0x1] %v1474
        %v1476 = vld [vmem:[%s942 + $0x30] sm:$0xf]
        %v1477 = vsel %vm1447, %v1200, %v1476
        %1478 = vst [vmem:[%s942 + $0x30] sm:$0xf] %v1477
        %1479 = vst.msk [vmem:[%s942 + $0x34] sm:$0xf] %vm933, %v1209
        %v1480 = vld [vmem:[%s942 + $0x38] sm:$0x1]
        %v1481 = vsel %vm945, %v1210, %v1480
        %1482 = vst [vmem:[%s942 + $0x38] sm:$0x1] %v1481
        %v1483 = vld [vmem:[%s942 + $0x3c] sm:$0xf]
        %v1484 = vsel %vm1447, %v1217, %v1483
        %1485 = vst [vmem:[%s942 + $0x3c] sm:$0xf] %v1484
        %1486 = vst.msk [vmem:[%s942 + $0x40] sm:$0xf] %vm933, %v1226
        %v1487 = vld [vmem:[%s942 + $0x44] sm:$0x1]
        %v1488 = vsel %vm945, %v1227, %v1487
        %1489 = vst [vmem:[%s942 + $0x44] sm:$0x1] %v1488
        %v1490 = vld [vmem:[%s942 + $0x48] sm:$0xf]
        %v1491 = vsel %vm1447, %v1234, %v1490
        %1492 = vst [vmem:[%s942 + $0x48] sm:$0xf] %v1491
        %1493 = vst.msk [vmem:[%s942 + $0x4c] sm:$0xf] %vm933, %v1243
        %v1494 = vld [vmem:[%s942 + $0x50] sm:$0x1]
        %v1495 = vsel %vm945, %v1244, %v1494
        %1496 = vst [vmem:[%s942 + $0x50] sm:$0x1] %v1495
        %v1497 = vld [vmem:[%s942 + $0x54] sm:$0xf]
        %v1498 = vsel %vm1447, %v1251, %v1497
        %1499 = vst [vmem:[%s942 + $0x54] sm:$0xf] %v1498
        %1500 = vst.msk [vmem:[%s942 + $0x58] sm:$0xf] %vm933, %v1260
        %v1501 = vld [vmem:[%s942 + $0x5c] sm:$0x1]
        %v1502 = vsel %vm945, %v1261, %v1501
        %1503 = vst [vmem:[%s942 + $0x5c] sm:$0x1] %v1502
        %v1504 = vld [vmem:[%s942 + $0x60] sm:$0xf]
        %v1505 = vsel %vm1447, %v1268, %v1504
        %1506 = vst [vmem:[%s942 + $0x60] sm:$0xf] %v1505
        %1507 = vst.msk [vmem:[%s942 + $0x64] sm:$0xf] %vm933, %v1277
        %v1508 = vld [vmem:[%s942 + $0x68] sm:$0x1]
        %v1509 = vsel %vm945, %v1278, %v1508
        %1510 = vst [vmem:[%s942 + $0x68] sm:$0x1] %v1509
        %v1511 = vld [vmem:[%s942 + $0x6c] sm:$0xf]
        %v1512 = vsel %vm1447, %v1285, %v1511
        %1513 = vst [vmem:[%s942 + $0x6c] sm:$0xf] %v1512
        %1514 = vst.msk [vmem:[%s942 + $0x70] sm:$0xf] %vm933, %v1294
        %v1515 = vld [vmem:[%s942 + $0x74] sm:$0x1]
        %v1516 = vsel %vm945, %v1295, %v1515
        %1517 = vst [vmem:[%s942 + $0x74] sm:$0x1] %v1516
        %v1518 = vld [vmem:[%s942 + $0x78] sm:$0xf]
        %v1519 = vsel %vm1447, %v1302, %v1518
        %1520 = vst [vmem:[%s942 + $0x78] sm:$0xf] %v1519
        %1521 = vst.msk [vmem:[%s942 + $0x7c] sm:$0xf] %vm933, %v1311
        %v1522 = vld [vmem:[%s942 + $0x80] sm:$0x1]
        %v1523 = vsel %vm945, %v1312, %v1522
        %1524 = vst [vmem:[%s942 + $0x80] sm:$0x1] %v1523
        %v1525 = vld [vmem:[%s942 + $0x84] sm:$0xf]
        %v1526 = vsel %vm1447, %v1319, %v1525
        %1527 = vst [vmem:[%s942 + $0x84] sm:$0xf] %v1526
        %1528 = vst.msk [vmem:[%s942 + $0x88] sm:$0xf] %vm933, %v1328
        %v1529 = vld [vmem:[%s942 + $0x8c] sm:$0x1]
        %v1530 = vsel %vm945, %v1329, %v1529
        %1531 = vst [vmem:[%s942 + $0x8c] sm:$0x1] %v1530
        %v1532 = vld [vmem:[%s942 + $0x90] sm:$0xf]
        %v1533 = vsel %vm1447, %v1336, %v1532
        %1534 = vst [vmem:[%s942 + $0x90] sm:$0xf] %v1533
        %1535 = vst.msk [vmem:[%s942 + $0x94] sm:$0xf] %vm933, %v1345
        %v1536 = vld [vmem:[%s942 + $0x98] sm:$0x1]
        %v1537 = vsel %vm945, %v1346, %v1536
        %1538 = vst [vmem:[%s942 + $0x98] sm:$0x1] %v1537
        %v1539 = vld [vmem:[%s942 + $0x9c] sm:$0xf]
        %v1540 = vsel %vm1447, %v1353, %v1539
        %1541 = vst [vmem:[%s942 + $0x9c] sm:$0xf] %v1540
        %1542 = vst.msk [vmem:[%s942 + $0xa0] sm:$0xf] %vm933, %v1362
        %v1543 = vld [vmem:[%s942 + $0xa4] sm:$0x1]
        %v1544 = vsel %vm945, %v1363, %v1543
        %1545 = vst [vmem:[%s942 + $0xa4] sm:$0x1] %v1544
        %v1546 = vld [vmem:[%s942 + $0xa8] sm:$0xf]
        %v1547 = vsel %vm1447, %v1370, %v1546
        %1548 = vst [vmem:[%s942 + $0xa8] sm:$0xf] %v1547
        %1549 = vst.msk [vmem:[%s942 + $0xac] sm:$0xf] %vm933, %v1379
        %v1550 = vld [vmem:[%s942 + $0xb0] sm:$0x1]
        %v1551 = vsel %vm945, %v1380, %v1550
        %1552 = vst [vmem:[%s942 + $0xb0] sm:$0x1] %v1551
        %v1553 = vld [vmem:[%s942 + $0xb4] sm:$0xf]
        %v1554 = vsel %vm1447, %v1387, %v1553
        %1555 = vst [vmem:[%s942 + $0xb4] sm:$0xf] %v1554
        %1556 = vst.msk [vmem:[%s942 + $0xb8] sm:$0xf] %vm933, %v1396
        %v1557 = vld [vmem:[%s942 + $0xbc] sm:$0x1]
        %v1558 = vsel %vm945, %v1397, %v1557
        %1559 = vst [vmem:[%s942 + $0xbc] sm:$0x1] %v1558
        %v1560 = vld [vmem:[#allocation2] sm:$0xf]
        %v1561 = vld [vmem:[#allocation2 + $0x4] sm:$0xf]
        %v1562 = vld [vmem:[#allocation2 + $0xc] sm:$0xf]
        %v1563 = vld [vmem:[#allocation2 + $0x10] sm:$0xf]
        %v1564 = vld [vmem:[#allocation2 + $0x18] sm:$0xf]
        %v1565 = vld [vmem:[#allocation2 + $0x1c] sm:$0xf]
        %v1566 = vld [vmem:[#allocation2 + $0x24] sm:$0xf]
        %v1567 = vld [vmem:[#allocation2 + $0x28] sm:$0xf]
        %v1568 = vld [vmem:[#allocation2 + $0x30] sm:$0xf]
        %v1569 = vld [vmem:[#allocation2 + $0x34] sm:$0xf]
        %v1570 = vld [vmem:[#allocation2 + $0x3c] sm:$0xf]
        %v1571 = vld [vmem:[#allocation2 + $0x40] sm:$0xf]
        %v1572 = vld [vmem:[#allocation2 + $0x48] sm:$0xf]
        %v1573 = vld [vmem:[#allocation2 + $0x4c] sm:$0xf]
        %v1574 = vld [vmem:[#allocation2 + $0x54] sm:$0xf]
        %v1575 = vld [vmem:[#allocation2 + $0x58] sm:$0xf]
        %v1576 = vld [vmem:[#allocation2 + $0x60] sm:$0xf]
        %v1577 = vld [vmem:[#allocation2 + $0x64] sm:$0xf]
        %v1578 = vld [vmem:[#allocation2 + $0x6c] sm:$0xf]
        %v1579 = vld [vmem:[#allocation2 + $0x70] sm:$0xf]
        %v1580 = vld [vmem:[#allocation2 + $0x78] sm:$0xf]
        %v1581 = vld [vmem:[#allocation2 + $0x7c] sm:$0xf]
        %v1582 = vld [vmem:[#allocation2 + $0x84] sm:$0xf]
        %v1583 = vld [vmem:[#allocation2 + $0x88] sm:$0xf]
        %v1584 = vld [vmem:[#allocation2 + $0x90] sm:$0xf]
        %v1585 = vld [vmem:[#allocation2 + $0x94] sm:$0xf]
        %v1586 = vld [vmem:[#allocation2 + $0x9c] sm:$0xf]
        %v1587 = vld [vmem:[#allocation2 + $0xa0] sm:$0xf]
        %v1588 = vld [vmem:[#allocation2 + $0xa8] sm:$0xf]
        %v1589 = vld [vmem:[#allocation2 + $0xac] sm:$0xf]
        %v1590 = vld [vmem:[#allocation2 + $0xb4] sm:$0xf]
        %v1591 = vld [vmem:[#allocation2 + $0xb8] sm:$0xf]
        %v1592 = vld [vmem:[#allocation2 + $0xc0] sm:$0xf]
        %v1593 = vld [vmem:[#allocation2 + $0xc4] sm:$0xf]
        %v1594 = vld [vmem:[#allocation2 + $0xcc] sm:$0xf]
        %v1595 = vld [vmem:[#allocation2 + $0xd0] sm:$0xf]
        %v1596 = vld [vmem:[#allocation2 + $0x8] sm:$0x1]
        %v1597 = vld [vmem:[#allocation2 + $0x14] sm:$0x1]
        %v1598 = vld [vmem:[#allocation2 + $0x20] sm:$0x1]
        %v1599 = vld [vmem:[#allocation2 + $0x2c] sm:$0x1]
        %v1600 = vld [vmem:[#allocation2 + $0x38] sm:$0x1]
        %v1601 = vld [vmem:[#allocation2 + $0x44] sm:$0x1]
        %v1602 = vld [vmem:[#allocation2 + $0x50] sm:$0x1]
        %v1603 = vld [vmem:[#allocation2 + $0x5c] sm:$0x1]
        %v1604 = vld [vmem:[#allocation2 + $0x68] sm:$0x1]
        %v1605 = vld [vmem:[#allocation2 + $0x74] sm:$0x1]
        %v1606 = vld [vmem:[#allocation2 + $0x80] sm:$0x1]
        %v1607 = vld [vmem:[#allocation2 + $0x8c] sm:$0x1]
        %v1608 = vld [vmem:[#allocation2 + $0x98] sm:$0x1]
        %v1609 = vld [vmem:[#allocation2 + $0xa4] sm:$0x1]
        %v1610 = vld [vmem:[#allocation2 + $0xb0] sm:$0x1]
        %v1611 = vld [vmem:[#allocation2 + $0xbc] sm:$0x1]
        %v1612 = vld [vmem:[#allocation2 + $0xc8] sm:$0x1]
        %v1613 = vld [vmem:[#allocation2 + $0xd4] sm:$0x1]
        %v1614 = vld [vmem:[#allocation2] sm:$0xe]
        %v1615 = vld [vmem:[#allocation2 + $0xc] sm:$0xe]
        %v1616 = vld [vmem:[#allocation2 + $0x18] sm:$0xe]
        %v1617 = vld [vmem:[#allocation2 + $0x24] sm:$0xe]
        %v1618 = vld [vmem:[#allocation2 + $0x30] sm:$0xe]
        %v1619 = vld [vmem:[#allocation2 + $0x3c] sm:$0xe]
        %v1620 = vld [vmem:[#allocation2 + $0x48] sm:$0xe]
        %v1621 = vld [vmem:[#allocation2 + $0x54] sm:$0xe]
        %v1622 = vld [vmem:[#allocation2 + $0x60] sm:$0xe]
        %v1623 = vld [vmem:[#allocation2 + $0x6c] sm:$0xe]
        %v1624 = vld [vmem:[#allocation2 + $0x78] sm:$0xe]
        %v1625 = vld [vmem:[#allocation2 + $0x84] sm:$0xe]
        %v1626 = vld [vmem:[#allocation2 + $0x90] sm:$0xe]
        %v1627 = vld [vmem:[#allocation2 + $0x9c] sm:$0xe]
        %v1628 = vld [vmem:[#allocation2 + $0xa8] sm:$0xe]
        %v1629 = vld [vmem:[#allocation2 + $0xb4] sm:$0xe]
        %v1630 = vld [vmem:[#allocation2 + $0xc0] sm:$0xe]
        %v1631 = vld [vmem:[#allocation2 + $0xcc] sm:$0xe]
        %v1664 = vunpack.c.l.b16 %v1560
        %v1665 = vunpack.c.l.b16 %v1561
        %v1666 = vunpack.c.l.b16 %v1562
        %v1667 = vunpack.c.l.b16 %v1563
        %v1668 = vunpack.c.l.b16 %v1564
        %v1669 = vunpack.c.l.b16 %v1565
        %v1670 = vunpack.c.l.b16 %v1566
        %v1671 = vunpack.c.l.b16 %v1567
        %v1672 = vunpack.c.l.b16 %v1568
        %v1673 = vunpack.c.l.b16 %v1569
        %v1674 = vunpack.c.l.b16 %v1570
        %v1675 = vunpack.c.l.b16 %v1571
        %v1676 = vunpack.c.l.b16 %v1572
        %v1677 = vunpack.c.l.b16 %v1573
        %v1678 = vunpack.c.l.b16 %v1574
        %v1679 = vunpack.c.l.b16 %v1575
        %v1680 = vunpack.c.l.b16 %v1576
        %v1681 = vunpack.c.l.b16 %v1577
        %v1682 = vunpack.c.l.b16 %v1578
        %v1683 = vunpack.c.l.b16 %v1579
        %v1684 = vunpack.c.l.b16 %v1580
        %v1685 = vunpack.c.l.b16 %v1581
        %v1686 = vunpack.c.l.b16 %v1582
        %v1687 = vunpack.c.l.b16 %v1583
        %v1688 = vunpack.c.l.b16 %v1584
        %v1689 = vunpack.c.l.b16 %v1585
        %v1690 = vunpack.c.l.b16 %v1586
        %v1691 = vunpack.c.l.b16 %v1587
        %v1692 = vunpack.c.l.b16 %v1588
        %v1693 = vunpack.c.l.b16 %v1589
        %v1694 = vunpack.c.l.b16 %v1590
        %v1695 = vunpack.c.l.b16 %v1591
        %v1696 = vpack.c.b16 %v1665, %v1664
        %v1697 = vpack.c.b16 %v1667, %v1666
        %v1698 = vpack.c.b16 %v1669, %v1668
        %v1699 = vpack.c.b16 %v1671, %v1670
        %v1700 = vpack.c.b16 %v1673, %v1672
        %v1701 = vpack.c.b16 %v1675, %v1674
        %v1702 = vpack.c.b16 %v1677, %v1676
        %v1703 = vpack.c.b16 %v1679, %v1678
        %v1704 = vpack.c.b16 %v1681, %v1680
        %v1705 = vpack.c.b16 %v1683, %v1682
        %v1706 = vpack.c.b16 %v1685, %v1684
        %v1707 = vpack.c.b16 %v1687, %v1686
        %v1708 = vpack.c.b16 %v1689, %v1688
        %v1709 = vpack.c.b16 %v1691, %v1690
        %v1710 = vpack.c.b16 %v1693, %v1692
        %v1711 = vpack.c.b16 %v1695, %v1694
        %v1728 = vunpack.c.l.b16 %v1596
        %v1729 = vunpack.c.l.b16 %v1597
        %v1730 = vunpack.c.l.b16 %v1598
        %v1731 = vunpack.c.l.b16 %v1599
        %v1732 = vunpack.c.l.b16 %v1600
        %v1733 = vunpack.c.l.b16 %v1601
        %v1734 = vunpack.c.l.b16 %v1602
        %v1735 = vunpack.c.l.b16 %v1603
        %v1736 = vunpack.c.l.b16 %v1604
        %v1737 = vunpack.c.l.b16 %v1605
        %v1738 = vunpack.c.l.b16 %v1606
        %v1739 = vunpack.c.l.b16 %v1607
        %v1740 = vunpack.c.l.b16 %v1608
        %v1741 = vunpack.c.l.b16 %v1609
        %v1742 = vunpack.c.l.b16 %v1610
        %v1743 = vunpack.c.l.b16 %v1611
        %v1744 = vpack.c.b16 %v1728, %v1728
        %v1745 = vpack.c.b16 %v1729, %v1729
        %v1746 = vpack.c.b16 %v1730, %v1730
        %v1747 = vpack.c.b16 %v1731, %v1731
        %v1748 = vpack.c.b16 %v1732, %v1732
        %v1749 = vpack.c.b16 %v1733, %v1733
        %v1750 = vpack.c.b16 %v1734, %v1734
        %v1751 = vpack.c.b16 %v1735, %v1735
        %v1752 = vpack.c.b16 %v1736, %v1736
        %v1753 = vpack.c.b16 %v1737, %v1737
        %v1754 = vpack.c.b16 %v1738, %v1738
        %v1755 = vpack.c.b16 %v1739, %v1739
        %v1756 = vpack.c.b16 %v1740, %v1740
        %v1757 = vpack.c.b16 %v1741, %v1741
        %v1758 = vpack.c.b16 %v1742, %v1742
        %v1759 = vpack.c.b16 %v1743, %v1743
        %vm1760 = vsmask.f32 7424
        %v1762 = vshrl.u32 %v1696, 16
        %v1764 = vshll.u32 %v1696, 16
        %v1766 = vrot.slane %v1764, 1
        %v1767 = vor.u32 %v1762, %v1766
        %v1769 = vshll.u32 %v1744, 16
        %v1771 = vrot.slane %v1769, 1
        %v1772 = vsel %vm1760, %v1767, %v1771
        %v1774 = vshrl.u32 %v1697, 16
        %v1776 = vshll.u32 %v1697, 16
        %v1778 = vrot.slane %v1776, 1
        %v1779 = vor.u32 %v1774, %v1778
        %v1781 = vshll.u32 %v1745, 16
        %v1783 = vrot.slane %v1781, 1
        %v1784 = vsel %vm1760, %v1779, %v1783
        %v1786 = vshrl.u32 %v1698, 16
        %v1788 = vshll.u32 %v1698, 16
        %v1790 = vrot.slane %v1788, 1
        %v1791 = vor.u32 %v1786, %v1790
        %v1793 = vshll.u32 %v1746, 16
        %v1795 = vrot.slane %v1793, 1
        %v1796 = vsel %vm1760, %v1791, %v1795
        %v1798 = vshrl.u32 %v1699, 16
        %v1800 = vshll.u32 %v1699, 16
        %v1802 = vrot.slane %v1800, 1
        %v1803 = vor.u32 %v1798, %v1802
        %v1805 = vshll.u32 %v1747, 16
        %v1807 = vrot.slane %v1805, 1
        %v1808 = vsel %vm1760, %v1803, %v1807
        %v1810 = vshrl.u32 %v1700, 16
        %v1812 = vshll.u32 %v1700, 16
        %v1814 = vrot.slane %v1812, 1
        %v1815 = vor.u32 %v1810, %v1814
        %v1817 = vshll.u32 %v1748, 16
        %v1819 = vrot.slane %v1817, 1
        %v1820 = vsel %vm1760, %v1815, %v1819
        %v1822 = vshrl.u32 %v1701, 16
        %v1824 = vshll.u32 %v1701, 16
        %v1826 = vrot.slane %v1824, 1
        %v1827 = vor.u32 %v1822, %v1826
        %v1829 = vshll.u32 %v1749, 16
        %v1831 = vrot.slane %v1829, 1
        %v1832 = vsel %vm1760, %v1827, %v1831
        %v1834 = vshrl.u32 %v1702, 16
        %v1836 = vshll.u32 %v1702, 16
        %v1838 = vrot.slane %v1836, 1
        %v1839 = vor.u32 %v1834, %v1838
        %v1841 = vshll.u32 %v1750, 16
        %v1843 = vrot.slane %v1841, 1
        %v1844 = vsel %vm1760, %v1839, %v1843
        %v1846 = vshrl.u32 %v1703, 16
        %v1848 = vshll.u32 %v1703, 16
        %v1850 = vrot.slane %v1848, 1
        %v1851 = vor.u32 %v1846, %v1850
        %v1853 = vshll.u32 %v1751, 16
        %v1855 = vrot.slane %v1853, 1
        %v1856 = vsel %vm1760, %v1851, %v1855
        %v1858 = vshrl.u32 %v1704, 16
        %v1860 = vshll.u32 %v1704, 16
        %v1862 = vrot.slane %v1860, 1
        %v1863 = vor.u32 %v1858, %v1862
        %v1865 = vshll.u32 %v1752, 16
        %v1867 = vrot.slane %v1865, 1
        %v1868 = vsel %vm1760, %v1863, %v1867
        %v1870 = vshrl.u32 %v1705, 16
        %v1872 = vshll.u32 %v1705, 16
        %v1874 = vrot.slane %v1872, 1
        %v1875 = vor.u32 %v1870, %v1874
        %v1877 = vshll.u32 %v1753, 16
        %v1879 = vrot.slane %v1877, 1
        %v1880 = vsel %vm1760, %v1875, %v1879
        %v1882 = vshrl.u32 %v1706, 16
        %v1884 = vshll.u32 %v1706, 16
        %v1886 = vrot.slane %v1884, 1
        %v1887 = vor.u32 %v1882, %v1886
        %v1889 = vshll.u32 %v1754, 16
        %v1891 = vrot.slane %v1889, 1
        %v1892 = vsel %vm1760, %v1887, %v1891
        %v1894 = vshrl.u32 %v1707, 16
        %v1896 = vshll.u32 %v1707, 16
        %v1898 = vrot.slane %v1896, 1
        %v1899 = vor.u32 %v1894, %v1898
        %v1901 = vshll.u32 %v1755, 16
        %v1903 = vrot.slane %v1901, 1
        %v1904 = vsel %vm1760, %v1899, %v1903
        %v1906 = vshrl.u32 %v1708, 16
        %v1908 = vshll.u32 %v1708, 16
        %v1910 = vrot.slane %v1908, 1
        %v1911 = vor.u32 %v1906, %v1910
        %v1913 = vshll.u32 %v1756, 16
        %v1915 = vrot.slane %v1913, 1
        %v1916 = vsel %vm1760, %v1911, %v1915
        %v1918 = vshrl.u32 %v1709, 16
        %v1920 = vshll.u32 %v1709, 16
        %v1922 = vrot.slane %v1920, 1
        %v1923 = vor.u32 %v1918, %v1922
        %v1925 = vshll.u32 %v1757, 16
        %v1927 = vrot.slane %v1925, 1
        %v1928 = vsel %vm1760, %v1923, %v1927
        %v1930 = vshrl.u32 %v1710, 16
        %v1932 = vshll.u32 %v1710, 16
        %v1934 = vrot.slane %v1932, 1
        %v1935 = vor.u32 %v1930, %v1934
        %v1937 = vshll.u32 %v1758, 16
        %v1939 = vrot.slane %v1937, 1
        %v1940 = vsel %vm1760, %v1935, %v1939
        %v1942 = vshrl.u32 %v1711, 16
        %v1944 = vshll.u32 %v1711, 16
        %v1946 = vrot.slane %v1944, 1
        %v1947 = vor.u32 %v1942, %v1946
        %v1949 = vshll.u32 %v1759, 16
        %v1951 = vrot.slane %v1949, 1
        %v1952 = vsel %vm1760, %v1947, %v1951
        %1953 = vrot.lane.b32.xlu0 %v1772, 8
        %v1954 = vpop.permute.xlu0 %1953
        %1955 = vrot.lane.b32.xlu0 %v1784, 8
        %v1956 = vpop.permute.xlu0 %1955
        %1957 = vrot.lane.b32.xlu0 %v1796, 8
        %v1958 = vpop.permute.xlu0 %1957
        %1959 = vrot.lane.b32.xlu0 %v1808, 8
        %v1960 = vpop.permute.xlu0 %1959
        %1961 = vrot.lane.b32.xlu0 %v1820, 8
        %v1962 = vpop.permute.xlu0 %1961
        %1963 = vrot.lane.b32.xlu0 %v1832, 8
        %v1964 = vpop.permute.xlu0 %1963
        %1965 = vrot.lane.b32.xlu0 %v1844, 8
        %v1966 = vpop.permute.xlu0 %1965
        %1967 = vrot.lane.b32.xlu0 %v1856, 8
        %v1968 = vpop.permute.xlu0 %1967
        %1969 = vrot.lane.b32.xlu0 %v1868, 8
        %v1970 = vpop.permute.xlu0 %1969
        %1971 = vrot.lane.b32.xlu0 %v1880, 8
        %v1972 = vpop.permute.xlu0 %1971
        %1973 = vrot.lane.b32.xlu0 %v1892, 8
        %v1974 = vpop.permute.xlu0 %1973
        %1975 = vrot.lane.b32.xlu0 %v1904, 8
        %v1976 = vpop.permute.xlu0 %1975
        %1977 = vrot.lane.b32.xlu0 %v1916, 8
        %v1978 = vpop.permute.xlu0 %1977
        %1979 = vrot.lane.b32.xlu0 %v1928, 8
        %v1980 = vpop.permute.xlu0 %1979
        %1981 = vrot.lane.b32.xlu0 %v1940, 8
        %v1982 = vpop.permute.xlu0 %1981
        %1983 = vrot.lane.b32.xlu0 %v1952, 8
        %v1984 = vpop.permute.xlu0 %1983
        %v2001 = vunpack.c.l.b16 %v1614
        %v2002 = vunpack.c.l.b16 %v1615
        %v2003 = vunpack.c.l.b16 %v1616
        %v2004 = vunpack.c.l.b16 %v1617
        %v2005 = vunpack.c.l.b16 %v1618
        %v2006 = vunpack.c.l.b16 %v1619
        %v2007 = vunpack.c.l.b16 %v1620
        %v2008 = vunpack.c.l.b16 %v1621
        %v2009 = vunpack.c.l.b16 %v1622
        %v2010 = vunpack.c.l.b16 %v1623
        %v2011 = vunpack.c.l.b16 %v1624
        %v2012 = vunpack.c.l.b16 %v1625
        %v2013 = vunpack.c.l.b16 %v1626
        %v2014 = vunpack.c.l.b16 %v1627
        %v2015 = vunpack.c.l.b16 %v1628
        %v2016 = vunpack.c.l.b16 %v1629
        %v2017 = vpack.c.b16 %v1665, %v2001
        %v2018 = vpack.c.b16 %v1667, %v2002
        %v2019 = vpack.c.b16 %v1669, %v2003
        %v2020 = vpack.c.b16 %v1671, %v2004
        %v2021 = vpack.c.b16 %v1673, %v2005
        %v2022 = vpack.c.b16 %v1675, %v2006
        %v2023 = vpack.c.b16 %v1677, %v2007
        %v2024 = vpack.c.b16 %v1679, %v2008
        %v2025 = vpack.c.b16 %v1681, %v2009
        %v2026 = vpack.c.b16 %v1683, %v2010
        %v2027 = vpack.c.b16 %v1685, %v2011
        %v2028 = vpack.c.b16 %v1687, %v2012
        %v2029 = vpack.c.b16 %v1689, %v2013
        %v2030 = vpack.c.b16 %v1691, %v2014
        %v2031 = vpack.c.b16 %v1693, %v2015
        %v2032 = vpack.c.b16 %v1695, %v2016
        %vm2033 = vcmask 1046528
        %v2034 = vrot.slane %v2017, 1
        %v2035 = vrot.slane %v1744, 1
        %v2036 = vsel %vm2033, %v2034, %v2035
        %v2037 = vrot.slane %v2018, 1
        %v2038 = vrot.slane %v1745, 1
        %v2039 = vsel %vm2033, %v2037, %v2038
        %v2040 = vrot.slane %v2019, 1
        %v2041 = vrot.slane %v1746, 1
        %v2042 = vsel %vm2033, %v2040, %v2041
        %v2043 = vrot.slane %v2020, 1
        %v2044 = vrot.slane %v1747, 1
        %v2045 = vsel %vm2033, %v2043, %v2044
        %v2046 = vrot.slane %v2021, 1
        %v2047 = vrot.slane %v1748, 1
        %v2048 = vsel %vm2033, %v2046, %v2047
        %v2049 = vrot.slane %v2022, 1
        %v2050 = vrot.slane %v1749, 1
        %v2051 = vsel %vm2033, %v2049, %v2050
        %v2052 = vrot.slane %v2023, 1
        %v2053 = vrot.slane %v1750, 1
        %v2054 = vsel %vm2033, %v2052, %v2053
        %v2055 = vrot.slane %v2024, 1
        %v2056 = vrot.slane %v1751, 1
        %v2057 = vsel %vm2033, %v2055, %v2056
        %v2058 = vrot.slane %v2025, 1
        %v2059 = vrot.slane %v1752, 1
        %v2060 = vsel %vm2033, %v2058, %v2059
        %v2061 = vrot.slane %v2026, 1
        %v2062 = vrot.slane %v1753, 1
        %v2063 = vsel %vm2033, %v2061, %v2062
        %v2064 = vrot.slane %v2027, 1
        %v2065 = vrot.slane %v1754, 1
        %v2066 = vsel %vm2033, %v2064, %v2065
        %v2067 = vrot.slane %v2028, 1
        %v2068 = vrot.slane %v1755, 1
        %v2069 = vsel %vm2033, %v2067, %v2068
        %v2070 = vrot.slane %v2029, 1
        %v2071 = vrot.slane %v1756, 1
        %v2072 = vsel %vm2033, %v2070, %v2071
        %v2073 = vrot.slane %v2030, 1
        %v2074 = vrot.slane %v1757, 1
        %v2075 = vsel %vm2033, %v2073, %v2074
        %v2076 = vrot.slane %v2031, 1
        %v2077 = vrot.slane %v1758, 1
        %v2078 = vsel %vm2033, %v2076, %v2077
        %v2079 = vrot.slane %v2032, 1
        %v2080 = vrot.slane %v1759, 1
        %v2081 = vsel %vm2033, %v2079, %v2080
        %2082 = vrot.lane.b32.xlu0 %v2036, 16
        %v2083 = vpop.permute.xlu0 %2082
        %2084 = vrot.lane.b32.xlu0 %v2039, 16
        %v2085 = vpop.permute.xlu0 %2084
        %2086 = vrot.lane.b32.xlu0 %v2042, 16
        %v2087 = vpop.permute.xlu0 %2086
        %2088 = vrot.lane.b32.xlu0 %v2045, 16
        %v2089 = vpop.permute.xlu0 %2088
        %2090 = vrot.lane.b32.xlu0 %v2048, 16
        %v2091 = vpop.permute.xlu0 %2090
        %2092 = vrot.lane.b32.xlu0 %v2051, 16
        %v2093 = vpop.permute.xlu0 %2092
        %2094 = vrot.lane.b32.xlu0 %v2054, 16
        %v2095 = vpop.permute.xlu0 %2094
        %2096 = vrot.lane.b32.xlu0 %v2057, 16
        %v2097 = vpop.permute.xlu0 %2096
        %2098 = vrot.lane.b32.xlu0 %v2060, 16
        %v2099 = vpop.permute.xlu0 %2098
        %2100 = vrot.lane.b32.xlu0 %v2063, 16
        %v2101 = vpop.permute.xlu0 %2100
        %2102 = vrot.lane.b32.xlu0 %v2066, 16
        %v2103 = vpop.permute.xlu0 %2102
        %2104 = vrot.lane.b32.xlu0 %v2069, 16
        %v2105 = vpop.permute.xlu0 %2104
        %2106 = vrot.lane.b32.xlu0 %v2072, 16
        %v2107 = vpop.permute.xlu0 %2106
        %2108 = vrot.lane.b32.xlu0 %v2075, 16
        %v2109 = vpop.permute.xlu0 %2108
        %2110 = vrot.lane.b32.xlu0 %v2078, 16
        %v2111 = vpop.permute.xlu0 %2110
        %2112 = vrot.lane.b32.xlu0 %v2081, 16
        %v2113 = vpop.permute.xlu0 %2112
        %v2116 = vunpack.c.l.b16 %v1592
        %v2117 = vunpack.c.l.b16 %v1593
        %v2118 = vpack.c.b16 %v2117, %v2116
        %2119 = vrot.lane.b32.xlu0 %v1697, 24
        %v2120 = vpop.permute.xlu0 %2119
        %2121 = vrot.lane.b32.xlu0 %v1698, 24
        %v2122 = vpop.permute.xlu0 %2121
        %2123 = vrot.lane.b32.xlu0 %v1699, 24
        %v2124 = vpop.permute.xlu0 %2123
        %2125 = vrot.lane.b32.xlu0 %v1700, 24
        %v2126 = vpop.permute.xlu0 %2125
        %2127 = vrot.lane.b32.xlu0 %v1701, 24
        %v2128 = vpop.permute.xlu0 %2127
        %2129 = vrot.lane.b32.xlu0 %v1702, 24
        %v2130 = vpop.permute.xlu0 %2129
        %2131 = vrot.lane.b32.xlu0 %v1703, 24
        %v2132 = vpop.permute.xlu0 %2131
        %2133 = vrot.lane.b32.xlu0 %v1704, 24
        %v2134 = vpop.permute.xlu0 %2133
        %2135 = vrot.lane.b32.xlu0 %v1705, 24
        %v2136 = vpop.permute.xlu0 %2135
        %2137 = vrot.lane.b32.xlu0 %v1706, 24
        %v2138 = vpop.permute.xlu0 %2137
        %2139 = vrot.lane.b32.xlu0 %v1707, 24
        %v2140 = vpop.permute.xlu0 %2139
        %2141 = vrot.lane.b32.xlu0 %v1708, 24
        %v2142 = vpop.permute.xlu0 %2141
        %2143 = vrot.lane.b32.xlu0 %v1709, 24
        %v2144 = vpop.permute.xlu0 %2143
        %2145 = vrot.lane.b32.xlu0 %v1710, 24
        %v2146 = vpop.permute.xlu0 %2145
        %2147 = vrot.lane.b32.xlu0 %v1711, 24
        %v2148 = vpop.permute.xlu0 %2147
        %2149 = vrot.lane.b32.xlu0 %v2118, 24
        %v2150 = vpop.permute.xlu0 %2149
        %v2152 = vunpack.c.l.b16 %v1612
        %v2153 = vpack.c.b16 %v2152, %v2152
        %v2155 = vshrl.u32 %v2118, 16
        %v2157 = vshll.u32 %v2118, 16
        %v2159 = vrot.slane %v2157, 1
        %v2160 = vor.u32 %v2155, %v2159
        %v2162 = vshll.u32 %v2153, 16
        %v2164 = vrot.slane %v2162, 1
        %v2165 = vsel %vm1760, %v2160, %v2164
        %2166 = vrot.lane.b32.xlu0 %v1784, 32
        %v2167 = vpop.permute.xlu0 %2166
        %2168 = vrot.lane.b32.xlu0 %v1796, 32
        %v2169 = vpop.permute.xlu0 %2168
        %2170 = vrot.lane.b32.xlu0 %v1808, 32
        %v2171 = vpop.permute.xlu0 %2170
        %2172 = vrot.lane.b32.xlu0 %v1820, 32
        %v2173 = vpop.permute.xlu0 %2172
        %2174 = vrot.lane.b32.xlu0 %v1832, 32
        %v2175 = vpop.permute.xlu0 %2174
        %2176 = vrot.lane.b32.xlu0 %v1844, 32
        %v2177 = vpop.permute.xlu0 %2176
        %2178 = vrot.lane.b32.xlu0 %v1856, 32
        %v2179 = vpop.permute.xlu0 %2178
        %2180 = vrot.lane.b32.xlu0 %v1868, 32
        %v2181 = vpop.permute.xlu0 %2180
        %2182 = vrot.lane.b32.xlu0 %v1880, 32
        %v2183 = vpop.permute.xlu0 %2182
        %2184 = vrot.lane.b32.xlu0 %v1892, 32
        %v2185 = vpop.permute.xlu0 %2184
        %2186 = vrot.lane.b32.xlu0 %v1904, 32
        %v2187 = vpop.permute.xlu0 %2186
        %2188 = vrot.lane.b32.xlu0 %v1916, 32
        %v2189 = vpop.permute.xlu0 %2188
        %2190 = vrot.lane.b32.xlu0 %v1928, 32
        %v2191 = vpop.permute.xlu0 %2190
        %2192 = vrot.lane.b32.xlu0 %v1940, 32
        %v2193 = vpop.permute.xlu0 %2192
        %2194 = vrot.lane.b32.xlu0 %v1952, 32
        %v2195 = vpop.permute.xlu0 %2194
        %2196 = vrot.lane.b32.xlu0 %v2165, 32
        %v2197 = vpop.permute.xlu0 %2196
        %v2199 = vunpack.c.l.b16 %v1630
        %v2200 = vpack.c.b16 %v2117, %v2199
        %v2201 = vrot.slane %v2200, 1
        %v2202 = vrot.slane %v2153, 1
        %v2203 = vsel %vm2033, %v2201, %v2202
        %2204 = vrot.lane.b32.xlu0 %v2039, 40
        %v2205 = vpop.permute.xlu0 %2204
        %2206 = vrot.lane.b32.xlu0 %v2042, 40
        %v2207 = vpop.permute.xlu0 %2206
        %2208 = vrot.lane.b32.xlu0 %v2045, 40
        %v2209 = vpop.permute.xlu0 %2208
        %2210 = vrot.lane.b32.xlu0 %v2048, 40
        %v2211 = vpop.permute.xlu0 %2210
        %2212 = vrot.lane.b32.xlu0 %v2051, 40
        %v2213 = vpop.permute.xlu0 %2212
        %2214 = vrot.lane.b32.xlu0 %v2054, 40
        %v2215 = vpop.permute.xlu0 %2214
        %2216 = vrot.lane.b32.xlu0 %v2057, 40
        %v2217 = vpop.permute.xlu0 %2216
        %2218 = vrot.lane.b32.xlu0 %v2060, 40
        %v2219 = vpop.permute.xlu0 %2218
        %2220 = vrot.lane.b32.xlu0 %v2063, 40
        %v2221 = vpop.permute.xlu0 %2220
        %2222 = vrot.lane.b32.xlu0 %v2066, 40
        %v2223 = vpop.permute.xlu0 %2222
        %2224 = vrot.lane.b32.xlu0 %v2069, 40
        %v2225 = vpop.permute.xlu0 %2224
        %2226 = vrot.lane.b32.xlu0 %v2072, 40
        %v2227 = vpop.permute.xlu0 %2226
        %2228 = vrot.lane.b32.xlu0 %v2075, 40
        %v2229 = vpop.permute.xlu0 %2228
        %2230 = vrot.lane.b32.xlu0 %v2078, 40
        %v2231 = vpop.permute.xlu0 %2230
        %2232 = vrot.lane.b32.xlu0 %v2081, 40
        %v2233 = vpop.permute.xlu0 %2232
        %2234 = vrot.lane.b32.xlu0 %v2203, 40
        %v2235 = vpop.permute.xlu0 %2234
        %v2238 = vunpack.c.l.b16 %v1594
        %v2239 = vunpack.c.l.b16 %v1595
        %v2240 = vpack.c.b16 %v2239, %v2238
        %2241 = vrot.lane.b32.xlu0 %v1698, 48
        %v2242 = vpop.permute.xlu0 %2241
        %2243 = vrot.lane.b32.xlu0 %v1699, 48
        %v2244 = vpop.permute.xlu0 %2243
        %2245 = vrot.lane.b32.xlu0 %v1700, 48
        %v2246 = vpop.permute.xlu0 %2245
        %2247 = vrot.lane.b32.xlu0 %v1701, 48
        %v2248 = vpop.permute.xlu0 %2247
        %2249 = vrot.lane.b32.xlu0 %v1702, 48
        %v2250 = vpop.permute.xlu0 %2249
        %2251 = vrot.lane.b32.xlu0 %v1703, 48
        %v2252 = vpop.permute.xlu0 %2251
        %2253 = vrot.lane.b32.xlu0 %v1704, 48
        %v2254 = vpop.permute.xlu0 %2253
        %2255 = vrot.lane.b32.xlu0 %v1705, 48
        %v2256 = vpop.permute.xlu0 %2255
        %2257 = vrot.lane.b32.xlu0 %v1706, 48
        %v2258 = vpop.permute.xlu0 %2257
        %2259 = vrot.lane.b32.xlu0 %v1707, 48
        %v2260 = vpop.permute.xlu0 %2259
        %2261 = vrot.lane.b32.xlu0 %v1708, 48
        %v2262 = vpop.permute.xlu0 %2261
        %2263 = vrot.lane.b32.xlu0 %v1709, 48
        %v2264 = vpop.permute.xlu0 %2263
        %2265 = vrot.lane.b32.xlu0 %v1710, 48
        %v2266 = vpop.permute.xlu0 %2265
        %2267 = vrot.lane.b32.xlu0 %v1711, 48
        %v2268 = vpop.permute.xlu0 %2267
        %2269 = vrot.lane.b32.xlu0 %v2118, 48
        %v2270 = vpop.permute.xlu0 %2269
        %2271 = vrot.lane.b32.xlu0 %v2240, 48
        %v2272 = vpop.permute.xlu0 %2271
        %v2274 = vunpack.c.l.b16 %v1613
        %v2275 = vpack.c.b16 %v2274, %v2274
        %v2277 = vshrl.u32 %v2240, 16
        %v2279 = vshll.u32 %v2240, 16
        %v2281 = vrot.slane %v2279, 1
        %v2282 = vor.u32 %v2277, %v2281
        %v2284 = vshll.u32 %v2275, 16
        %v2286 = vrot.slane %v2284, 1
        %v2287 = vsel %vm1760, %v2282, %v2286
        %2288 = vrot.lane.b32.xlu0 %v1796, 56
        %v2289 = vpop.permute.xlu0 %2288
        %2290 = vrot.lane.b32.xlu0 %v1808, 56
        %v2291 = vpop.permute.xlu0 %2290
        %2292 = vrot.lane.b32.xlu0 %v1820, 56
        %v2293 = vpop.permute.xlu0 %2292
        %2294 = vrot.lane.b32.xlu0 %v1832, 56
        %v2295 = vpop.permute.xlu0 %2294
        %2296 = vrot.lane.b32.xlu0 %v1844, 56
        %v2297 = vpop.permute.xlu0 %2296
        %2298 = vrot.lane.b32.xlu0 %v1856, 56
        %v2299 = vpop.permute.xlu0 %2298
        %2300 = vrot.lane.b32.xlu0 %v1868, 56
        %v2301 = vpop.permute.xlu0 %2300
        %2302 = vrot.lane.b32.xlu0 %v1880, 56
        %v2303 = vpop.permute.xlu0 %2302
        %2304 = vrot.lane.b32.xlu0 %v1892, 56
        %v2305 = vpop.permute.xlu0 %2304
        %2306 = vrot.lane.b32.xlu0 %v1904, 56
        %v2307 = vpop.permute.xlu0 %2306
        %2308 = vrot.lane.b32.xlu0 %v1916, 56
        %v2309 = vpop.permute.xlu0 %2308
        %2310 = vrot.lane.b32.xlu0 %v1928, 56
        %v2311 = vpop.permute.xlu0 %2310
        %2312 = vrot.lane.b32.xlu0 %v1940, 56
        %v2313 = vpop.permute.xlu0 %2312
        %2314 = vrot.lane.b32.xlu0 %v1952, 56
        %v2315 = vpop.permute.xlu0 %2314
        %2316 = vrot.lane.b32.xlu0 %v2165, 56
        %v2317 = vpop.permute.xlu0 %2316
        %2318 = vrot.lane.b32.xlu0 %v2287, 56
        %v2319 = vpop.permute.xlu0 %2318
        %v2321 = vunpack.c.l.b16 %v1631
        %v2322 = vpack.c.b16 %v2239, %v2321
        %v2323 = vrot.slane %v2322, 1
        %v2324 = vrot.slane %v2275, 1
        %v2325 = vsel %vm2033, %v2323, %v2324
        %2326 = vrot.lane.b32.xlu0 %v2042, 64
        %v2327 = vpop.permute.xlu0 %2326
        %2328 = vrot.lane.b32.xlu0 %v2045, 64
        %v2329 = vpop.permute.xlu0 %2328
        %2330 = vrot.lane.b32.xlu0 %v2048, 64
        %v2331 = vpop.permute.xlu0 %2330
        %2332 = vrot.lane.b32.xlu0 %v2051, 64
        %v2333 = vpop.permute.xlu0 %2332
        %2334 = vrot.lane.b32.xlu0 %v2054, 64
        %v2335 = vpop.permute.xlu0 %2334
        %2336 = vrot.lane.b32.xlu0 %v2057, 64
        %v2337 = vpop.permute.xlu0 %2336
        %2338 = vrot.lane.b32.xlu0 %v2060, 64
        %v2339 = vpop.permute.xlu0 %2338
        %2340 = vrot.lane.b32.xlu0 %v2063, 64
        %v2341 = vpop.permute.xlu0 %2340
        %2342 = vrot.lane.b32.xlu0 %v2066, 64
        %v2343 = vpop.permute.xlu0 %2342
        %2344 = vrot.lane.b32.xlu0 %v2069, 64
        %v2345 = vpop.permute.xlu0 %2344
        %2346 = vrot.lane.b32.xlu0 %v2072, 64
        %v2347 = vpop.permute.xlu0 %2346
        %2348 = vrot.lane.b32.xlu0 %v2075, 64
        %v2349 = vpop.permute.xlu0 %2348
        %2350 = vrot.lane.b32.xlu0 %v2078, 64
        %v2351 = vpop.permute.xlu0 %2350
        %2352 = vrot.lane.b32.xlu0 %v2081, 64
        %v2353 = vpop.permute.xlu0 %2352
        %2354 = vrot.lane.b32.xlu0 %v2203, 64
        %v2355 = vpop.permute.xlu0 %2354
        %2356 = vrot.lane.b32.xlu0 %v2325, 64
        %v2357 = vpop.permute.xlu0 %2356
        %v2359 = vsel %vm719, %v1696, %v1954
        %v2361 = vsel %vm719, %v1697, %v1956
        %v2363 = vsel %vm719, %v1698, %v1958
        %v2365 = vsel %vm719, %v1699, %v1960
        %v2367 = vsel %vm719, %v1700, %v1962
        %v2369 = vsel %vm719, %v1701, %v1964
        %v2371 = vsel %vm719, %v1702, %v1966
        %v2373 = vsel %vm719, %v1703, %v1968
        %v2375 = vsel %vm719, %v1704, %v1970
        %v2377 = vsel %vm719, %v1705, %v1972
        %v2379 = vsel %vm719, %v1706, %v1974
        %v2381 = vsel %vm719, %v1707, %v1976
        %v2383 = vsel %vm719, %v1708, %v1978
        %v2385 = vsel %vm719, %v1709, %v1980
        %v2387 = vsel %vm719, %v1710, %v1982
        %v2389 = vsel %vm719, %v1711, %v1984
        %vm2390 = vcmask 130048
        %v2392 = vsel %vm2390, %v2359, %v2083
        %v2394 = vsel %vm2390, %v2361, %v2085
        %v2396 = vsel %vm2390, %v2363, %v2087
        %v2398 = vsel %vm2390, %v2365, %v2089
        %v2400 = vsel %vm2390, %v2367, %v2091
        %v2402 = vsel %vm2390, %v2369, %v2093
        %v2404 = vsel %vm2390, %v2371, %v2095
        %v2406 = vsel %vm2390, %v2373, %v2097
        %v2408 = vsel %vm2390, %v2375, %v2099
        %v2410 = vsel %vm2390, %v2377, %v2101
        %v2412 = vsel %vm2390, %v2379, %v2103
        %v2414 = vsel %vm2390, %v2381, %v2105
        %v2416 = vsel %vm2390, %v2383, %v2107
        %v2418 = vsel %vm2390, %v2385, %v2109
        %v2420 = vsel %vm2390, %v2387, %v2111
        %v2422 = vsel %vm2390, %v2389, %v2113
        %vm2423 = vcmask 195584
        %v2425 = vsel %vm2423, %v2392, %v2120
        %v2427 = vsel %vm2423, %v2394, %v2122
        %v2429 = vsel %vm2423, %v2396, %v2124
        %v2431 = vsel %vm2423, %v2398, %v2126
        %v2433 = vsel %vm2423, %v2400, %v2128
        %v2435 = vsel %vm2423, %v2402, %v2130
        %v2437 = vsel %vm2423, %v2404, %v2132
        %v2439 = vsel %vm2423, %v2406, %v2134
        %v2441 = vsel %vm2423, %v2408, %v2136
        %v2443 = vsel %vm2423, %v2410, %v2138
        %v2445 = vsel %vm2423, %v2412, %v2140
        %v2447 = vsel %vm2423, %v2414, %v2142
        %v2449 = vsel %vm2423, %v2416, %v2144
        %v2451 = vsel %vm2423, %v2418, %v2146
        %v2453 = vsel %vm2423, %v2420, %v2148
        %v2455 = vsel %vm2423, %v2422, %v2150
        %vm2456 = vcmask 261120
        %v2458 = vsel %vm2456, %v2425, %v2167
        %v2460 = vsel %vm2456, %v2427, %v2169
        %v2462 = vsel %vm2456, %v2429, %v2171
        %v2464 = vsel %vm2456, %v2431, %v2173
        %v2466 = vsel %vm2456, %v2433, %v2175
        %v2468 = vsel %vm2456, %v2435, %v2177
        %v2470 = vsel %vm2456, %v2437, %v2179
        %v2472 = vsel %vm2456, %v2439, %v2181
        %v2474 = vsel %vm2456, %v2441, %v2183
        %v2476 = vsel %vm2456, %v2443, %v2185
        %v2478 = vsel %vm2456, %v2445, %v2187
        %v2480 = vsel %vm2456, %v2447, %v2189
        %v2482 = vsel %vm2456, %v2449, %v2191
        %v2484 = vsel %vm2456, %v2451, %v2193
        %v2486 = vsel %vm2456, %v2453, %v2195
        %v2488 = vsel %vm2456, %v2455, %v2197
        %vm2489 = vcmask 326656
        %v2491 = vsel %vm2489, %v2458, %v2205
        %v2493 = vsel %vm2489, %v2460, %v2207
        %v2495 = vsel %vm2489, %v2462, %v2209
        %v2497 = vsel %vm2489, %v2464, %v2211
        %v2499 = vsel %vm2489, %v2466, %v2213
        %v2501 = vsel %vm2489, %v2468, %v2215
        %v2503 = vsel %vm2489, %v2470, %v2217
        %v2505 = vsel %vm2489, %v2472, %v2219
        %v2507 = vsel %vm2489, %v2474, %v2221
        %v2509 = vsel %vm2489, %v2476, %v2223
        %v2511 = vsel %vm2489, %v2478, %v2225
        %v2513 = vsel %vm2489, %v2480, %v2227
        %v2515 = vsel %vm2489, %v2482, %v2229
        %v2517 = vsel %vm2489, %v2484, %v2231
        %v2519 = vsel %vm2489, %v2486, %v2233
        %v2521 = vsel %vm2489, %v2488, %v2235
        %vm2522 = vcmask 392192
        %v2524 = vsel %vm2522, %v2491, %v2242
        %v2526 = vsel %vm2522, %v2493, %v2244
        %v2528 = vsel %vm2522, %v2495, %v2246
        %v2530 = vsel %vm2522, %v2497, %v2248
        %v2532 = vsel %vm2522, %v2499, %v2250
        %v2534 = vsel %vm2522, %v2501, %v2252
        %v2536 = vsel %vm2522, %v2503, %v2254
        %v2538 = vsel %vm2522, %v2505, %v2256
        %v2540 = vsel %vm2522, %v2507, %v2258
        %v2542 = vsel %vm2522, %v2509, %v2260
        %v2544 = vsel %vm2522, %v2511, %v2262
        %v2546 = vsel %vm2522, %v2513, %v2264
        %v2548 = vsel %vm2522, %v2515, %v2266
        %v2550 = vsel %vm2522, %v2517, %v2268
        %v2552 = vsel %vm2522, %v2519, %v2270
        %v2554 = vsel %vm2522, %v2521, %v2272
        %vm2555 = vcmask 457728
        %v2557 = vsel %vm2555, %v2524, %v2289
        %v2559 = vsel %vm2555, %v2526, %v2291
        %v2561 = vsel %vm2555, %v2528, %v2293
        %v2563 = vsel %vm2555, %v2530, %v2295
        %v2565 = vsel %vm2555, %v2532, %v2297
        %v2567 = vsel %vm2555, %v2534, %v2299
        %v2569 = vsel %vm2555, %v2536, %v2301
        %v2571 = vsel %vm2555, %v2538, %v2303
        %v2573 = vsel %vm2555, %v2540, %v2305
        %v2575 = vsel %vm2555, %v2542, %v2307
        %v2577 = vsel %vm2555, %v2544, %v2309
        %v2579 = vsel %vm2555, %v2546, %v2311
        %v2581 = vsel %vm2555, %v2548, %v2313
        %v2583 = vsel %vm2555, %v2550, %v2315
        %v2585 = vsel %vm2555, %v2552, %v2317
        %v2587 = vsel %vm2555, %v2554, %v2319
        %vm2588 = vcmask 523264
        %v2590 = vsel %vm2588, %v2557, %v2327
        %v2592 = vsel %vm2588, %v2559, %v2329
        %v2594 = vsel %vm2588, %v2561, %v2331
        %v2596 = vsel %vm2588, %v2563, %v2333
        %v2598 = vsel %vm2588, %v2565, %v2335
        %v2600 = vsel %vm2588, %v2567, %v2337
        %v2602 = vsel %vm2588, %v2569, %v2339
        %v2604 = vsel %vm2588, %v2571, %v2341
        %v2606 = vsel %vm2588, %v2573, %v2343
        %v2608 = vsel %vm2588, %v2575, %v2345
        %v2610 = vsel %vm2588, %v2577, %v2347
        %v2612 = vsel %vm2588, %v2579, %v2349
        %v2614 = vsel %vm2588, %v2581, %v2351
        %v2616 = vsel %vm2588, %v2583, %v2353
        %v2618 = vsel %vm2588, %v2585, %v2355
        %v2620 = vsel %vm2588, %v2587, %v2357
        %v2621 = vld [vmem:[#allocation11] sm:$0xf]
        %v2622 = vld [vmem:[#allocation11 + $0x4] sm:$0xf]
        %v2623 = vld [vmem:[#allocation11 + $0x8] sm:$0xf]
        %v2624 = vld [vmem:[#allocation11 + $0xc] sm:$0xf]
        %v2625 = vld [vmem:[#allocation11 + $0x10] sm:$0xf]
        %v2626 = vld [vmem:[#allocation11 + $0x14] sm:$0xf]
        %v2627 = vld [vmem:[#allocation11 + $0x18] sm:$0xf]
        %v2628 = vld [vmem:[#allocation11 + $0x1c] sm:$0xf]
        %v2629 = vld [vmem:[#allocation11 + $0x20] sm:$0xf]
        %v2639 = vunpack.c.l.b16 %v2621
        %v2640 = vunpack.c.l.b16 %v2622
        %v2641 = vunpack.c.l.b16 %v2623
        %v2642 = vunpack.c.l.b16 %v2624
        %v2643 = vunpack.c.l.b16 %v2625
        %v2644 = vunpack.c.l.b16 %v2626
        %v2645 = vunpack.c.l.b16 %v2627
        %v2646 = vunpack.c.l.b16 %v2628
        %v2647 = vunpack.c.l.b16 %v2629
        %v2648 = vpack.c.b16 %v2640, %v2639
        %v2649 = vpack.c.b16 %v2642, %v2641
        %v2650 = vpack.c.b16 %v2644, %v2643
        %v2651 = vpack.c.b16 %v2646, %v2645
        %v2652 = vpack.c.b16 %v2647, %v2647
        %vm2657 = vcmask 588800
        %v2658 = vsel %vm2657, %v2590, 0
        %v2660 = vsel %vm2657, %v2592, 0
        %v2662 = vsel %vm2657, %v2594, 0
        %v2664 = vsel %vm2657, %v2596, 0
        %v2666 = vsel %vm2657, %v2598, 0
        %v2668 = vsel %vm2657, %v2600, 0
        %v2670 = vsel %vm2657, %v2602, 0
        %v2672 = vsel %vm2657, %v2604, 0
        %v2674 = vsel %vm2657, %v2606, 0
        %v2676 = vsel %vm2657, %v2608, 0
        %v2678 = vsel %vm2657, %v2610, 0
        %v2680 = vsel %vm2657, %v2612, 0
        %v2682 = vsel %vm2657, %v2614, 0
        %v2684 = vsel %vm2657, %v2616, 0
        %v2686 = vsel %vm2657, %v2618, 0
        %v2688 = vsel %vm2657, %v2620, 0
        %v2691 = vsel %vm768, %v2652, 0
        %2693 = vmatprep.subr.bf16.mxu0 0
        %2694 = vmatpush1.bf16.msra.mxu0 %v2648
        %2695 = vmatprep.subr.bf16.mxu0 0
        %2696 = vmatpush1.bf16.msra.mxu0 %v2649
        %2697 = vmatprep.subr.bf16.mxu0 0
        %2698 = vmatpush1.bf16.msra.mxu0 %v2650
        %2699 = vmatprep.subr.bf16.mxu0 0
        %2700 = vmatpush1.bf16.msra.mxu0 %v2651
        %2701 = vmatprep.subr.bf16.mxu0 0
        %2702 = vmatpush1.bf16.msra.mxu0 %v2691
        %2703 = vmatprep.subr.bf16.mxu0 0
        %2704 = vmatpush1.bf16.msra.mxu0 0
        %2705 = vmatprep.subr.bf16.mxu0 0
        %2706 = vmatpush1.bf16.msra.mxu0 0
        %2707 = vmatprep.subr.bf16.mxu0 0
        %2708 = vmatpush1.bf16.msra.mxu0 0
        %2709 = vmatprep.subr.bf16.mxu0 0
        %2710 = vmatpush1.bf16.msra.mxu0 0
        %2711 = vmatprep.subr.bf16.mxu0 0
        %2712 = vmatpush1.bf16.msra.mxu0 0
        %2713 = vmatprep.subr.bf16.mxu0 0
        %2714 = vmatpush1.bf16.msra.mxu0 0
        %2715 = vmatprep.subr.bf16.mxu0 0
        %2716 = vmatpush1.bf16.msra.mxu0 0
        %2717 = vmatprep.subr.bf16.mxu0 0
        %2718 = vmatpush1.bf16.msra.mxu0 0
        %2719 = vmatprep.subr.bf16.mxu0 0
        %2720 = vmatpush1.bf16.msra.mxu0 0
        %2721 = vmatprep.subr.bf16.mxu0 0
        %2722 = vmatpush1.bf16.msra.mxu0 0
        %2723 = vmatprep.subr.bf16.mxu0 0
        %2724 = vmatpush1.bf16.msra.mxu0 0
        %2725 = vmatprep.mubr.bf16.mxu0 0
        %2726 = vmatmul.mubr.bf16.gmra.mrb[0].mxu0 %v2658
        %v2727 = vpop.f32.mrb[0].mxu0
        %v2728 = vadd.f32 0.0, %v2727
        %v2729 = vpop.f32.mrb[0].mxu0
        %v2730 = vpop.f32.mrb[0].mxu0
        %v2731 = vadd.f32 0.0, %v2730
        %v2732 = vpop.f32.mrb[0].mxu0
        %2733 = vmatprep.mubr.bf16.mxu0 0
        %2734 = vmatmul.mubr.bf16.gmra.mrb[0].mxu0 %v2660
        %v2735 = vpop.f32.mrb[0].mxu0
        %v2736 = vadd.f32 0.0, %v2735
        %v2737 = vpop.f32.mrb[0].mxu0
        %v2738 = vpop.f32.mrb[0].mxu0
        %v2739 = vadd.f32 0.0, %v2738
        %v2740 = vpop.f32.mrb[0].mxu0
        %2741 = vmatprep.mubr.bf16.mxu0 0
        %2742 = vmatmul.mubr.bf16.gmra.mrb[0].mxu0 %v2662
        %v2743 = vpop.f32.mrb[0].mxu0
        %v2744 = vadd.f32 0.0, %v2743
        %v2745 = vpop.f32.mrb[0].mxu0
        %v2746 = vpop.f32.mrb[0].mxu0
        %v2747 = vadd.f32 0.0, %v2746
        %v2748 = vpop.f32.mrb[0].mxu0
        %2749 = vmatprep.mubr.bf16.mxu0 0
        %2750 = vmatmul.mubr.bf16.gmra.mrb[0].mxu0 %v2664
        %v2751 = vpop.f32.mrb[0].mxu0
        %v2752 = vadd.f32 0.0, %v2751
        %v2753 = vpop.f32.mrb[0].mxu0
        %v2754 = vpop.f32.mrb[0].mxu0
        %v2755 = vadd.f32 0.0, %v2754
        %v2756 = vpop.f32.mrb[0].mxu0
        %2757 = vmatprep.mubr.bf16.mxu0 0
        %2758 = vmatmul.mubr.bf16.gmra.mrb[0].mxu0 %v2666
        %v2759 = vpop.f32.mrb[0].mxu0
        %v2760 = vadd.f32 0.0, %v2759
        %v2761 = vpop.f32.mrb[0].mxu0
        %v2762 = vpop.f32.mrb[0].mxu0
        %v2763 = vadd.f32 0.0, %v2762
        %v2764 = vpop.f32.mrb[0].mxu0
        %2765 = vmatprep.mubr.bf16.mxu0 0
        %2766 = vmatmul.mubr.bf16.gmra.mrb[0].mxu0 %v2668
        %v2767 = vpop.f32.mrb[0].mxu0
        %v2768 = vadd.f32 0.0, %v2767
        %v2769 = vpop.f32.mrb[0].mxu0
        %v2770 = vpop.f32.mrb[0].mxu0
        %v2771 = vadd.f32 0.0, %v2770
        %v2772 = vpop.f32.mrb[0].mxu0
        %2773 = vmatprep.mubr.bf16.mxu0 0
        %2774 = vmatmul.mubr.bf16.gmra.mrb[0].mxu0 %v2670
        %v2775 = vpop.f32.mrb[0].mxu0
        %v2776 = vadd.f32 0.0, %v2775
        %v2777 = vpop.f32.mrb[0].mxu0
        %v2778 = vpop.f32.mrb[0].mxu0
        %v2779 = vadd.f32 0.0, %v2778
        %v2780 = vpop.f32.mrb[0].mxu0
        %2781 = vmatprep.mubr.bf16.mxu0 0
        %2782 = vmatmul.mubr.bf16.gmra.mrb[0].mxu0 %v2672
        %v2783 = vpop.f32.mrb[0].mxu0
        %v2784 = vadd.f32 0.0, %v2783
        %v2785 = vpop.f32.mrb[0].mxu0
        %v2786 = vpop.f32.mrb[0].mxu0
        %v2787 = vadd.f32 0.0, %v2786
        %v2788 = vpop.f32.mrb[0].mxu0
        %2789 = vmatprep.mubr.bf16.mxu0 0
        %2790 = vmatmul.mubr.bf16.gmra.mrb[0].mxu0 %v2674
        %v2791 = vpop.f32.mrb[0].mxu0
        %v2792 = vadd.f32 0.0, %v2791
        %v2793 = vpop.f32.mrb[0].mxu0
        %v2794 = vpop.f32.mrb[0].mxu0
        %v2795 = vadd.f32 0.0, %v2794
        %v2796 = vpop.f32.mrb[0].mxu0
        %2797 = vmatprep.mubr.bf16.mxu0 0
        %2798 = vmatmul.mubr.bf16.gmra.mrb[0].mxu0 %v2676
        %v2799 = vpop.f32.mrb[0].mxu0
        %v2800 = vadd.f32 0.0, %v2799
        %v2801 = vpop.f32.mrb[0].mxu0
        %v2802 = vpop.f32.mrb[0].mxu0
        %v2803 = vadd.f32 0.0, %v2802
        %v2804 = vpop.f32.mrb[0].mxu0
        %2805 = vmatprep.mubr.bf16.mxu0 0
        %2806 = vmatmul.mubr.bf16.gmra.mrb[0].mxu0 %v2678
        %v2807 = vpop.f32.mrb[0].mxu0
        %v2808 = vadd.f32 0.0, %v2807
        %v2809 = vpop.f32.mrb[0].mxu0
        %v2810 = vpop.f32.mrb[0].mxu0
        %v2811 = vadd.f32 0.0, %v2810
        %v2812 = vpop.f32.mrb[0].mxu0
        %2813 = vmatprep.mubr.bf16.mxu0 0
        %2814 = vmatmul.mubr.bf16.gmra.mrb[0].mxu0 %v2680
        %v2815 = vpop.f32.mrb[0].mxu0
        %v2816 = vadd.f32 0.0, %v2815
        %v2817 = vpop.f32.mrb[0].mxu0
        %v2818 = vpop.f32.mrb[0].mxu0
        %v2819 = vadd.f32 0.0, %v2818
        %v2820 = vpop.f32.mrb[0].mxu0
        %2821 = vmatprep.mubr.bf16.mxu0 0
        %2822 = vmatmul.mubr.bf16.gmra.mrb[0].mxu0 %v2682
        %v2823 = vpop.f32.mrb[0].mxu0
        %v2824 = vadd.f32 0.0, %v2823
        %v2825 = vpop.f32.mrb[0].mxu0
        %v2826 = vpop.f32.mrb[0].mxu0
        %v2827 = vadd.f32 0.0, %v2826
        %v2828 = vpop.f32.mrb[0].mxu0
        %2829 = vmatprep.mubr.bf16.mxu0 0
        %2830 = vmatmul.mubr.bf16.gmra.mrb[0].mxu0 %v2684
        %v2831 = vpop.f32.mrb[0].mxu0
        %v2832 = vadd.f32 0.0, %v2831
        %v2833 = vpop.f32.mrb[0].mxu0
        %v2834 = vpop.f32.mrb[0].mxu0
        %v2835 = vadd.f32 0.0, %v2834
        %v2836 = vpop.f32.mrb[0].mxu0
        %2837 = vmatprep.mubr.bf16.mxu0 0
        %2838 = vmatmul.mubr.bf16.gmra.mrb[0].mxu0 %v2686
        %v2839 = vpop.f32.mrb[0].mxu0
        %v2840 = vadd.f32 0.0, %v2839
        %v2841 = vpop.f32.mrb[0].mxu0
        %v2842 = vpop.f32.mrb[0].mxu0
        %v2843 = vadd.f32 0.0, %v2842
        %v2844 = vpop.f32.mrb[0].mxu0
        %2845 = vmatprep.mubr.bf16.mxu0 0
        %2846 = vmatmul.mubr.bf16.gmra.mrb[0].mxu0 %v2688
        %v2847 = vpop.f32.mrb[0].mxu0
        %v2848 = vadd.f32 0.0, %v2847
        %v2849 = vpop.f32.mrb[0].mxu0
        %v2850 = vpop.f32.mrb[0].mxu0
        %v2851 = vadd.f32 0.0, %v2850
        %v2852 = vpop.f32.mrb[0].mxu0
        %2853 = vdwg.mxu0
        %2886 = vrot.lane.b32.xlu0 %v2728, 16
        %v2887 = vpop.permute.xlu0 %2886
        %2888 = vrot.lane.b32.xlu0 %v2731, 16
        %v2889 = vpop.permute.xlu0 %2888
        %2890 = vrot.lane.b32.xlu0 %v2736, 16
        %v2891 = vpop.permute.xlu0 %2890
        %2892 = vrot.lane.b32.xlu0 %v2739, 16
        %v2893 = vpop.permute.xlu0 %2892
        %2894 = vrot.lane.b32.xlu0 %v2744, 16
        %v2895 = vpop.permute.xlu0 %2894
        %2896 = vrot.lane.b32.xlu0 %v2747, 16
        %v2897 = vpop.permute.xlu0 %2896
        %2898 = vrot.lane.b32.xlu0 %v2752, 16
        %v2899 = vpop.permute.xlu0 %2898
        %2900 = vrot.lane.b32.xlu0 %v2755, 16
        %v2901 = vpop.permute.xlu0 %2900
        %2902 = vrot.lane.b32.xlu0 %v2760, 16
        %v2903 = vpop.permute.xlu0 %2902
        %2904 = vrot.lane.b32.xlu0 %v2763, 16
        %v2905 = vpop.permute.xlu0 %2904
        %2906 = vrot.lane.b32.xlu0 %v2768, 16
        %v2907 = vpop.permute.xlu0 %2906
        %2908 = vrot.lane.b32.xlu0 %v2771, 16
        %v2909 = vpop.permute.xlu0 %2908
        %2910 = vrot.lane.b32.xlu0 %v2776, 16
        %v2911 = vpop.permute.xlu0 %2910
        %2912 = vrot.lane.b32.xlu0 %v2779, 16
        %v2913 = vpop.permute.xlu0 %2912
        %2914 = vrot.lane.b32.xlu0 %v2784, 16
        %v2915 = vpop.permute.xlu0 %2914
        %2916 = vrot.lane.b32.xlu0 %v2787, 16
        %v2917 = vpop.permute.xlu0 %2916
        %2918 = vrot.lane.b32.xlu0 %v2792, 16
        %v2919 = vpop.permute.xlu0 %2918
        %2920 = vrot.lane.b32.xlu0 %v2795, 16
        %v2921 = vpop.permute.xlu0 %2920
        %2922 = vrot.lane.b32.xlu0 %v2800, 16
        %v2923 = vpop.permute.xlu0 %2922
        %2924 = vrot.lane.b32.xlu0 %v2803, 16
        %v2925 = vpop.permute.xlu0 %2924
        %2926 = vrot.lane.b32.xlu0 %v2808, 16
        %v2927 = vpop.permute.xlu0 %2926
        %2928 = vrot.lane.b32.xlu0 %v2811, 16
        %v2929 = vpop.permute.xlu0 %2928
        %2930 = vrot.lane.b32.xlu0 %v2816, 16
        %v2931 = vpop.permute.xlu0 %2930
        %2932 = vrot.lane.b32.xlu0 %v2819, 16
        %v2933 = vpop.permute.xlu0 %2932
        %2934 = vrot.lane.b32.xlu0 %v2824, 16
        %v2935 = vpop.permute.xlu0 %2934
        %2936 = vrot.lane.b32.xlu0 %v2827, 16
        %v2937 = vpop.permute.xlu0 %2936
        %2938 = vrot.lane.b32.xlu0 %v2832, 16
        %v2939 = vpop.permute.xlu0 %2938
        %2940 = vrot.lane.b32.xlu0 %v2835, 16
        %v2941 = vpop.permute.xlu0 %2940
        %2942 = vrot.lane.b32.xlu0 %v2840, 16
        %v2943 = vpop.permute.xlu0 %2942
        %2944 = vrot.lane.b32.xlu0 %v2843, 16
        %v2945 = vpop.permute.xlu0 %2944
        %2946 = vrot.lane.b32.xlu0 %v2848, 16
        %v2947 = vpop.permute.xlu0 %2946
        %2948 = vrot.lane.b32.xlu0 %v2851, 16
        %v2949 = vpop.permute.xlu0 %2948
        %v2982 = vsel %vm2390, %v807, %v2887
        %v2983 = vsel %vm2390, %v810, %v2889
        %v2984 = vsel %vm2390, %v815, %v2891
        %v2985 = vsel %vm2390, %v818, %v2893
        %v2986 = vsel %vm2390, %v823, %v2895
        %v2987 = vsel %vm2390, %v826, %v2897
        %v2988 = vsel %vm2390, %v831, %v2899
        %v2989 = vsel %vm2390, %v834, %v2901
        %v2990 = vsel %vm2390, %v839, %v2903
        %v2991 = vsel %vm2390, %v842, %v2905
        %v2992 = vsel %vm2390, %v847, %v2907
        %v2993 = vsel %vm2390, %v850, %v2909
        %v2994 = vsel %vm2390, %v855, %v2911
        %v2995 = vsel %vm2390, %v858, %v2913
        %v2996 = vsel %vm2390, %v863, %v2915
        %v2997 = vsel %vm2390, %v866, %v2917
        %v2998 = vsel %vm2390, %v871, %v2919
        %v2999 = vsel %vm2390, %v874, %v2921
        %v3000 = vsel %vm2390, %v879, %v2923
        %v3001 = vsel %vm2390, %v882, %v2925
        %v3002 = vsel %vm2390, %v887, %v2927
        %v3003 = vsel %vm2390, %v890, %v2929
        %v3004 = vsel %vm2390, %v895, %v2931
        %v3005 = vsel %vm2390, %v898, %v2933
        %v3006 = vsel %vm2390, %v903, %v2935
        %v3007 = vsel %vm2390, %v906, %v2937
        %v3008 = vsel %vm2390, %v911, %v2939
        %v3009 = vsel %vm2390, %v914, %v2941
        %v3010 = vsel %vm2390, %v919, %v2943
        %v3011 = vsel %vm2390, %v922, %v2945
        %v3012 = vsel %vm2390, %v927, %v2947
        %v3013 = vsel %vm2390, %v930, %v2949
        %v3014 = vld [vmem:[#allocation12] sm:$0x1]
        %v3016 = vlaneseq
        %v3017 = vshrl.u32 %v3016, 7
        %v3018 = vsub.s32 0, %v3017
        %v3019 = vrot.slane %v3014, %v3018
        %v3021 = vadd.f32 %v2982, %v3019
        %v3022 = vadd.f32 %v2983, %v3019
        %v3023 = vadd.f32 %v2984, %v3019
        %v3024 = vadd.f32 %v2985, %v3019
        %v3025 = vadd.f32 %v2986, %v3019
        %v3026 = vadd.f32 %v2987, %v3019
        %v3027 = vadd.f32 %v2988, %v3019
        %v3028 = vadd.f32 %v2989, %v3019
        %v3029 = vadd.f32 %v2990, %v3019
        %v3030 = vadd.f32 %v2991, %v3019
        %v3031 = vadd.f32 %v2992, %v3019
        %v3032 = vadd.f32 %v2993, %v3019
        %v3033 = vadd.f32 %v2994, %v3019
        %v3034 = vadd.f32 %v2995, %v3019
        %v3035 = vadd.f32 %v2996, %v3019
        %v3036 = vadd.f32 %v2997, %v3019
        %v3037 = vadd.f32 %v2998, %v3019
        %v3038 = vadd.f32 %v2999, %v3019
        %v3039 = vadd.f32 %v3000, %v3019
        %v3040 = vadd.f32 %v3001, %v3019
        %v3041 = vadd.f32 %v3002, %v3019
        %v3042 = vadd.f32 %v3003, %v3019
        %v3043 = vadd.f32 %v3004, %v3019
        %v3044 = vadd.f32 %v3005, %v3019
        %v3045 = vadd.f32 %v3006, %v3019
        %v3046 = vadd.f32 %v3007, %v3019
        %v3047 = vadd.f32 %v3008, %v3019
        %v3048 = vadd.f32 %v3009, %v3019
        %v3049 = vadd.f32 %v3010, %v3019
        %v3050 = vadd.f32 %v3011, %v3019
        %v3051 = vadd.f32 %v3012, %v3019
        %v3052 = vadd.f32 %v3013, %v3019
        %v3053 = vmax.f32 %v3021, 0.0
        %v3054 = vmax.f32 %v3022, 0.0
        %v3055 = vmax.f32 %v3023, 0.0
        %v3056 = vmax.f32 %v3024, 0.0
        %v3057 = vmax.f32 %v3025, 0.0
        %v3058 = vmax.f32 %v3026, 0.0
        %v3059 = vmax.f32 %v3027, 0.0
        %v3060 = vmax.f32 %v3028, 0.0
        %v3061 = vmax.f32 %v3029, 0.0
        %v3062 = vmax.f32 %v3030, 0.0
        %v3063 = vmax.f32 %v3031, 0.0
        %v3064 = vmax.f32 %v3032, 0.0
        %v3065 = vmax.f32 %v3033, 0.0
        %v3066 = vmax.f32 %v3034, 0.0
        %v3067 = vmax.f32 %v3035, 0.0
        %v3068 = vmax.f32 %v3036, 0.0
        %v3069 = vmax.f32 %v3037, 0.0
        %v3070 = vmax.f32 %v3038, 0.0
        %v3071 = vmax.f32 %v3039, 0.0
        %v3072 = vmax.f32 %v3040, 0.0
        %v3073 = vmax.f32 %v3041, 0.0
        %v3074 = vmax.f32 %v3042, 0.0
        %v3075 = vmax.f32 %v3043, 0.0
        %v3076 = vmax.f32 %v3044, 0.0
        %v3077 = vmax.f32 %v3045, 0.0
        %v3078 = vmax.f32 %v3046, 0.0
        %v3079 = vmax.f32 %v3047, 0.0
        %v3080 = vmax.f32 %v3048, 0.0
        %v3081 = vmax.f32 %v3049, 0.0
        %v3082 = vmax.f32 %v3050, 0.0
        %v3083 = vmax.f32 %v3051, 0.0
        %v3084 = vmax.f32 %v3052, 0.0
        %v3085 = vpack.c.bf16 %v3054, %v3053
        %v3086 = vpack.c.bf16 %v3056, %v3055
        %v3087 = vpack.c.bf16 %v3058, %v3057
        %v3088 = vpack.c.bf16 %v3060, %v3059
        %v3089 = vpack.c.bf16 %v3062, %v3061
        %v3090 = vpack.c.bf16 %v3064, %v3063
        %v3091 = vpack.c.bf16 %v3066, %v3065
        %v3092 = vpack.c.bf16 %v3068, %v3067
        %v3093 = vpack.c.bf16 %v3070, %v3069
        %v3094 = vpack.c.bf16 %v3072, %v3071
        %v3095 = vpack.c.bf16 %v3074, %v3073
        %v3096 = vpack.c.bf16 %v3076, %v3075
        %v3097 = vpack.c.bf16 %v3078, %v3077
        %v3098 = vpack.c.bf16 %v3080, %v3079
        %v3099 = vpack.c.bf16 %v3082, %v3081
        %v3100 = vpack.c.bf16 %v3084, %v3083
        %v3117 = vunpack.c.l.b16 %v3085
        %v3118 = vunpack.c.h.b16 %v3085
        %v3119 = vunpack.c.l.b16 %v3086
        %v3120 = vunpack.c.h.b16 %v3086
        %v3121 = vunpack.c.l.b16 %v3087
        %v3122 = vunpack.c.h.b16 %v3087
        %v3123 = vunpack.c.l.b16 %v3088
        %v3124 = vunpack.c.h.b16 %v3088
        %v3125 = vunpack.c.l.b16 %v3089
        %v3126 = vunpack.c.h.b16 %v3089
        %v3127 = vunpack.c.l.b16 %v3090
        %v3128 = vunpack.c.h.b16 %v3090
        %v3129 = vunpack.c.l.b16 %v3091
        %v3130 = vunpack.c.h.b16 %v3091
        %v3131 = vunpack.c.l.b16 %v3092
        %v3132 = vunpack.c.h.b16 %v3092
        %v3133 = vunpack.c.l.b16 %v3093
        %v3134 = vunpack.c.h.b16 %v3093
        %v3135 = vunpack.c.l.b16 %v3094
        %v3136 = vunpack.c.h.b16 %v3094
        %v3137 = vunpack.c.l.b16 %v3095
        %v3138 = vunpack.c.h.b16 %v3095
        %v3139 = vunpack.c.l.b16 %v3096
        %v3140 = vunpack.c.h.b16 %v3096
        %v3141 = vunpack.c.l.b16 %v3097
        %v3142 = vunpack.c.h.b16 %v3097
        %v3143 = vunpack.c.l.b16 %v3098
        %v3144 = vunpack.c.h.b16 %v3098
        %v3145 = vunpack.c.l.b16 %v3099
        %v3146 = vunpack.c.h.b16 %v3099
        %v3147 = vunpack.c.l.b16 %v3100
        %v3148 = vunpack.c.h.b16 %v3100
        %v3149 = vpack.c.b16 %v3117, %v3117
        %v3150 = vpack.c.b16 %v3118, %v3118
        %v3151 = vpack.c.b16 %v3119, %v3119
        %v3152 = vpack.c.b16 %v3120, %v3120
        %v3153 = vpack.c.b16 %v3121, %v3121
        %v3154 = vpack.c.b16 %v3122, %v3122
        %v3155 = vpack.c.b16 %v3123, %v3123
        %v3156 = vpack.c.b16 %v3124, %v3124
        %v3157 = vpack.c.b16 %v3125, %v3125
        %v3158 = vpack.c.b16 %v3126, %v3126
        %v3159 = vpack.c.b16 %v3127, %v3127
        %v3160 = vpack.c.b16 %v3128, %v3128
        %v3161 = vpack.c.b16 %v3129, %v3129
        %v3162 = vpack.c.b16 %v3130, %v3130
        %v3163 = vpack.c.b16 %v3131, %v3131
        %v3164 = vpack.c.b16 %v3132, %v3132
        %v3165 = vpack.c.b16 %v3133, %v3133
        %v3166 = vpack.c.b16 %v3134, %v3134
        %v3167 = vpack.c.b16 %v3135, %v3135
        %v3168 = vpack.c.b16 %v3136, %v3136
        %v3169 = vpack.c.b16 %v3137, %v3137
        %v3170 = vpack.c.b16 %v3138, %v3138
        %v3171 = vpack.c.b16 %v3139, %v3139
        %v3172 = vpack.c.b16 %v3140, %v3140
        %v3173 = vpack.c.b16 %v3141, %v3141
        %v3174 = vpack.c.b16 %v3142, %v3142
        %v3175 = vpack.c.b16 %v3143, %v3143
        %v3176 = vpack.c.b16 %v3144, %v3144
        %v3177 = vpack.c.b16 %v3145, %v3145
        %v3178 = vpack.c.b16 %v3146, %v3146
        %v3179 = vpack.c.b16 %v3147, %v3147
        %v3180 = vpack.c.b16 %v3148, %v3148
        %vm3213 = vcmask 257024
        %3214 = vst.msk [vmem:[%s334] sm:$0xf] %vm3213, %v3149
        %3215 = vst.msk [vmem:[%s334 + $0x4] sm:$0xf] %vm3213, %v3150
        %3216 = vst.msk [vmem:[%s334 + $0x8] sm:$0xf] %vm3213, %v3151
        %3217 = vst.msk [vmem:[%s334 + $0xc] sm:$0xf] %vm3213, %v3152
        %3218 = vst.msk [vmem:[%s334 + $0x10] sm:$0xf] %vm3213, %v3153
        %3219 = vst.msk [vmem:[%s334 + $0x14] sm:$0xf] %vm3213, %v3154
        %3220 = vst.msk [vmem:[%s334 + $0x18] sm:$0xf] %vm3213, %v3155
        %3221 = vst.msk [vmem:[%s334 + $0x1c] sm:$0xf] %vm3213, %v3156
        %3222 = vst.msk [vmem:[%s334 + $0x20] sm:$0xf] %vm3213, %v3157
        %3223 = vst.msk [vmem:[%s334 + $0x24] sm:$0xf] %vm3213, %v3158
        %3224 = vst.msk [vmem:[%s334 + $0x28] sm:$0xf] %vm3213, %v3159
        %3225 = vst.msk [vmem:[%s334 + $0x2c] sm:$0xf] %vm3213, %v3160
        %3226 = vst.msk [vmem:[%s334 + $0x30] sm:$0xf] %vm3213, %v3161
        %3227 = vst.msk [vmem:[%s334 + $0x34] sm:$0xf] %vm3213, %v3162
        %3228 = vst.msk [vmem:[%s334 + $0x38] sm:$0xf] %vm3213, %v3163
        %3229 = vst.msk [vmem:[%s334 + $0x3c] sm:$0xf] %vm3213, %v3164
        %3230 = vst.msk [vmem:[%s334 + $0x40] sm:$0xf] %vm3213, %v3165
        %3231 = vst.msk [vmem:[%s334 + $0x44] sm:$0xf] %vm3213, %v3166
        %3232 = vst.msk [vmem:[%s334 + $0x48] sm:$0xf] %vm3213, %v3167
        %3233 = vst.msk [vmem:[%s334 + $0x4c] sm:$0xf] %vm3213, %v3168
        %3234 = vst.msk [vmem:[%s334 + $0x50] sm:$0xf] %vm3213, %v3169
        %3235 = vst.msk [vmem:[%s334 + $0x54] sm:$0xf] %vm3213, %v3170
        %3236 = vst.msk [vmem:[%s334 + $0x58] sm:$0xf] %vm3213, %v3171
        %3237 = vst.msk [vmem:[%s334 + $0x5c] sm:$0xf] %vm3213, %v3172
        %3238 = vst.msk [vmem:[%s334 + $0x60] sm:$0xf] %vm3213, %v3173
        %3239 = vst.msk [vmem:[%s334 + $0x64] sm:$0xf] %vm3213, %v3174
        %3240 = vst.msk [vmem:[%s334 + $0x68] sm:$0xf] %vm3213, %v3175
        %3241 = vst.msk [vmem:[%s334 + $0x6c] sm:$0xf] %vm3213, %v3176
        %3242 = vst.msk [vmem:[%s334 + $0x70] sm:$0xf] %vm3213, %v3177
        %3243 = vst.msk [vmem:[%s334 + $0x74] sm:$0xf] %vm3213, %v3178
        %3244 = vst.msk [vmem:[%s334 + $0x78] sm:$0xf] %vm3213, %v3179
        %3245 = vst.msk [vmem:[%s334 + $0x7c] sm:$0xf] %vm3213, %v3180
        %s3246 = sand.u32 %s165, 1
        %s3247 = scalar_lea.sflag [#allocation5], %s3246
        %s3248 = sand.u32 %s165, 1
        %s3249 = smul.addr %s3248, 128
        %s3250 = scalar_lea.vmem [#allocation14], %s3249
        // Predicated region
        $region69: #{tpu_custom_call.1} parent=43 // pred_check
          %p3251 = pneg %p175
        $region70: #{tpu_custom_call.1} parent=43 // pred_check_branch
          %3253 = sbr.rel (%p3251) target = $region72
        $region71: #{tpu_custom_call.1} parent=43 // pred_region
          %s3255 = ssub.s32 2048, 2048
          %3256 = vsyncadd %s3247, %s3255
          %s3257 = smul.addr %s26, 32
          %s3258 = smul.addr %s3257, 64
          %s3259 = scalar_lea.hbm %s6, %s3258
          %s3260 = sshll.u32 %s3250, 4
          %s3261 = int_to_ptr.vmem [resolvable:$true] %s3260
          %3266 = dma.vmem_to_hbm [thread:$0]  %s3261, 2048, %s3259, %s3247, 64, 64, 4
        $region72: #{tpu_custom_call.1} parent=43 // pred_fallthru
          _
      $region44: #{tpu_custom_call.1} parent=5 // pred_fallthru
        _
      %p3267 = scmp.le.s32.totalorder 2, %s21
      // Predicated region
      $region73: #{tpu_custom_call.1} parent=5 // pred_check
        %p3268 = pneg %p3267
      $region74: #{tpu_custom_call.1} parent=5 // pred_check_branch
        %3270 = sbr.rel (%p3268) target = $region76
      $region75: #{tpu_custom_call.1} parent=5 // pred_region
        %s3271 = ssub.s32 %s21, 2
        // Predicated region
        $region77: #{tpu_custom_call.1} parent=75 // pred_check
          %p3272 = pneg %p181
        $region78: #{tpu_custom_call.1} parent=75 // pred_check_branch
          %3274 = sbr.rel (%p3272) target = $region80
        $region79: #{tpu_custom_call.1} parent=75 // pred_region
          %s3275 = sand.u32 %s166, 1
          %s3276 = scalar_lea.sflag [#allocation5], %s3275
          %s3277 = sand.u32 %s166, 1
          %s3278 = smul.addr %s3277, 128
          %s3279 = scalar_lea.vmem [#allocation14], %s3278
          %3280 = dma.done %s3276, 2048
        $region80: #{tpu_custom_call.1} parent=75 // pred_fallthru
          _
      $region76: #{tpu_custom_call.1} parent=5 // pred_fallthru
        _
    $region6: #{tpu_custom_call.1} parent=1 // loop_footer
      %s25 = sadd.s32 1, %s21
    $region7: #{tpu_custom_call.1} parent=1 // loop_footer_branch
      %20 = sbr.rel target = $region3
    $region8: #{tpu_custom_call.1} parent=1 // loop_exit
      _
    %3281 = vsyncpa [#allocation4], 1
    %s3282 = scalar_lea.sflag [#allocation4], 1
    %3283 = vsyncpa %s3282, 1
    %3284 = vsyncpa [#allocation7], 1
    %3285 = vsyncpa [#allocation10], 1
    %3286 = vsyncpa [#allocation13], 1
    %3287 = vsyncpa [#allocation5], 1
    %s3288 = scalar_lea.sflag [#allocation5], 1
    %3289 = vsyncpa %s3288, 1

</llo_original>
